<compile_context>
chip_gen: v6e
topology: v6e:2x2x1
jax: 0.10.0
libtpu: 0.0.40
codegen_flags: <defaults>
</compile_context>

<pallas_src>
import jax
import jax.numpy as jnp
from jax import lax
from jax.experimental import pallas as pl
from jax.experimental.pallas import tpu as pltpu

EPS = 1e-5
LANE = 128   # TPU lane width; feature / output dims are zero-padded up to this


def _batch_block(b, max_tb=8):
    """Largest divisor of b that is <= max_tb (images per grid step)."""
    tb = min(b, max_tb)
    while b % tb:
        tb -= 1
    return tb


# --------------------- phase A: conv3x3 + ReLU + avg-pool --------------------

def _conv_pool_kernel(p_ref, cw_ref, cb_ref, feat_ref):
    """One batch block: a single K=9*C MXU matmul over im2col patches,
    bias + ReLU, global average pool -> (TB, 128) pooled feature rows."""
    tb, hw, kc = p_ref.shape
    lane = cw_ref.shape[-1]
    # (TB, HW, 9C) -> (TB*HW, 9C): merges leading dim into sublanes only
    # (HW is a multiple of 8), so no relayout copy.
    lhs = p_ref[...].reshape(tb * hw, kc)
    y = jnp.dot(lhs, cw_ref[...], preferred_element_type=jnp.float32)
    y = jnp.maximum(y + cb_ref[...], 0.0)                       # bias + ReLU
    pooled = jnp.sum(y.reshape(tb, hw, lane), axis=1) * (1.0 / hw)
    feat_ref[...] = pooled                                       # lane-dense store


# ------------------------- phase B: projection head --------------------------

def _head_kernel(feat_ref, w1_ref, b1_ref, g1_ref, be1_ref,
                 w2_ref, b2_ref, g2_ref, o_ref):
    """Linear -> BatchNorm1d -> ReLU -> Linear -> BatchNorm1dNoBias over the
    whole batch (BN needs batch statistics across ALL rows)."""
    feat = feat_ref[...]                                         # (B, 128)
    h = jnp.dot(feat, w1_ref[...],
                preferred_element_type=jnp.float32) + b1_ref[...]
    mu = jnp.mean(h, axis=0, keepdims=True)
    var = jnp.mean((h - mu) ** 2, axis=0, keepdims=True)         # biased var
    h = (h - mu) * lax.rsqrt(var + EPS) * g1_ref[...] + be1_ref[...]
    h = jnp.maximum(h, 0.0)                                      # ReLU
    z = jnp.dot(h, w2_ref[...],
                preferred_element_type=jnp.float32) + b2_ref[...]
    mu2 = jnp.mean(z, axis=0, keepdims=True)
    var2 = jnp.mean((z - mu2) ** 2, axis=0, keepdims=True)
    # BatchNorm1dNoBias: beta frozen at 0 -> no additive term.
    o_ref[...] = (z - mu2) * lax.rsqrt(var2 + EPS) * g2_ref[...]


# -------------------------------- JAX wrapper --------------------------------

def simclr_forward(x_nchw, params):
    B, C, H, W = x_nchw.shape
    HW = H * W
    KC = 9 * C
    feat_dim = params["conv_w"].shape[-1]          # 32
    hidden = params["w1"].shape[-1]                # 512
    out_dim = params["w2"].shape[-1]               # 4

    # ---- im2col in the wrapper: layout plumbing only (no FLOPs moved) ------
    # Presents the conv as one lane-dense (TB*HW, 36) x (36, 128) matmul.
    x = jnp.transpose(x_nchw, (0, 2, 3, 1)).astype(jnp.float32)   # NHWC
    xp = jnp.pad(x, ((0, 0), (1, 1), (1, 1), (0, 0)))
    cols = [xp[:, di:di + H, dj:dj + W, :] for di in range(3) for dj in range(3)]
    patches = jnp.concatenate(cols, axis=-1).reshape(B, HW, KC)   # (B, HW, 36)

    # ---- lane-dense parameter padding (zero padding is numerically inert) --
    cw = jnp.pad(params["conv_w"].reshape(KC, feat_dim),
                 ((0, 0), (0, LANE - feat_dim)))                  # (36, 128)
    cb = jnp.pad(params["conv_b"], ((0, 0), (0, LANE - feat_dim)))
    w1 = jnp.pad(params["w1"], ((0, LANE - feat_dim), (0, 0)))    # (128, 512)
    w2 = jnp.pad(params["w2"], ((0, 0), (0, LANE - out_dim)))     # (512, 128)
    b2 = jnp.pad(params["b2"], ((0, 0), (0, LANE - out_dim)))
    g2 = jnp.pad(params["g2"], ((0, 0), (0, LANE - out_dim)))
    b1, g1, be1 = params["b1"], params["g1"], params["be1"]
    # NOTE: for production sizes cast patches/cw/w1/w2 to bf16 here on
    # v6e/v7x (f32 accumulation already set via preferred_element_type).

    # ---- phase A: conv + ReLU + pool, "parallel" batch-block axis ----------
    TB = _batch_block(B)                       # images per grid step
    nblk = B // TB
    conv_flops = 2 * B * HW * KC * LANE
    conv_bytes = 4 * (patches.size + cw.size + cb.size + B * LANE)

    feats = pl.pallas_call(
        _conv_pool_kernel,
        out_shape=jax.ShapeDtypeStruct((B, LANE), jnp.float32),
        grid=(nblk,),
        in_specs=[
            pl.BlockSpec((TB, HW, KC), lambda i: (i, 0, 0)),      # patches
            pl.BlockSpec((KC, LANE), lambda i: (0, 0)),           # conv w
            pl.BlockSpec((1, LANE), lambda i: (0, 0)),            # conv b
        ],
        out_specs=pl.BlockSpec((TB, LANE), lambda i: (i, 0)),
        compiler_params=pltpu.CompilerParams(
            dimension_semantics=("parallel",)),                   # megacore OK
        cost_estimate=pl.CostEstimate(flops=conv_flops, transcendentals=0,
                                      bytes_accessed=conv_bytes),
    )(patches, cw, cb)

    # ---- phase B: projection head (needs the whole batch for BN) -----------
    head_flops = 2 * B * LANE * hidden + 2 * B * hidden * LANE
    head_bytes = 4 * (feats.size + w1.size + w2.size
                      + 3 * hidden + 3 * LANE + B * LANE)
    out_padded = pl.pallas_call(
        _head_kernel,
        out_shape=jax.ShapeDtypeStruct((B, LANE), jnp.float32),
        cost_estimate=pl.CostEstimate(flops=head_flops,
                                      transcendentals=hidden + LANE,
                                      bytes_accessed=head_bytes),
    )(feats, w1, b1, g1, be1, w2, b2, g2)

    return out_padded[:, :out_dim]


# -------------------------------- pure-JAX check -----------------------------

def simclr_reference(x_nchw, params):
    """Independent pure-JAX mirror of the same forward pass (validation)."""
    B, C, H, W = x_nchw.shape
    feat_dim = params["conv_w"].shape[-1]
    w = params["conv_w"].reshape(3, 3, C, feat_dim)               # HWIO
    y = lax.conv_general_dilated(
        x_nchw.astype(jnp.float32), w, window_strides=(1, 1), padding="SAME",
        dimension_numbers=("NCHW", "HWIO", "NHWC"))               # (B,H,W,F)
    y = jnp.maximum(y + params["conv_b"], 0.0)
    feat = jnp.mean(y, axis=(1, 2))                               # (B, F)

    h = feat @ params["w1"] + params["b1"]
    mu = jnp.mean(h, 0, keepdims=True)
    var = jnp.mean((h - mu) ** 2, 0, keepdims=True)
    h = (h - mu) * lax.rsqrt(var + EPS) * params["g1"] + params["be1"]
    h = jnp.maximum(h, 0.0)
    z = h @ params["w2"] + params["b2"]
    mu2 = jnp.mean(z, 0, keepdims=True)
    var2 = jnp.mean((z - mu2) ** 2, 0, keepdims=True)
    return (z - mu2) * lax.rsqrt(var2 + EPS) * params["g2"]


def init_params(key, c_in=4, feat=32, hidden=512, out_features=4):
    k = jax.random.split(key, 6)
    return {
        # conv weight in tap-major layout: conv_w[di*3+dj, c, f] == torch W[f, c, di, dj]
        "conv_w": 0.1 * jax.random.normal(k[0], (9, c_in, feat), jnp.float32),
        "conv_b": 0.05 * jax.random.normal(k[1], (1, feat), jnp.float32),
        "w1": 0.05 * jax.random.normal(k[2], (feat, hidden), jnp.float32),
        "b1": 0.01 * jax.random.normal(k[3], (1, hidden), jnp.float32),
        "g1": jnp.ones((1, hidden), jnp.float32),       # BatchNorm1d(512) weight
        "be1": jnp.zeros((1, hidden), jnp.float32),     # BatchNorm1d(512) bias
        "w2": 0.05 * jax.random.normal(k[4], (hidden, out_features), jnp.float32),
        "b2": 0.01 * jax.random.normal(k[5], (1, out_features), jnp.float32),
        "g2": jnp.ones((1, out_features), jnp.float32),  # no-bias BN weight
    }


if __name__ == "__main__":
    key = jax.random.PRNGKey(0)
    kx, kp = jax.random.split(key)
    # batch=2, channels=4, spatial=16x16 (NCHW, like the PyTorch module)
    x = jax.random.normal(kx, (2, 4, 16, 16), jnp.float32)
    params = init_params(kp)

    out = jax.block_until_ready(jax.jit(simclr_forward)(x, params))
    ref = jax.block_until_ready(simclr_reference(x, params))

    assert out.shape == (2, 4), out.shape
    assert bool(jnp.allclose(out, ref, rtol=1e-3, atol=1e-3)), (out, ref)
    print("KERNEL_OK")
</pallas_src>

<mosaic_0001>
module attributes {stable_mosaic.version = 11 : i64} {
  func.func @_conv_pool_kernel(%arg0: i32, %arg1: memref<2x256x36xf32, #tpu.memory_space<vmem>>, %arg2: memref<36x128xf32, #tpu.memory_space<vmem>>, %arg3: memref<1x128xf32, #tpu.memory_space<vmem>>, %arg4: memref<2x128xf32, #tpu.memory_space<vmem>>) attributes {dimension_semantics = [#tpu.dimension_semantics<parallel>], iteration_bounds = array<i64: 1>, scalar_prefetch = 0 : i64, scratch_operands = 0 : i64, tpu.core_type = #tpu.core_type<tc>, window_params = [{transform_indices = @transform_0, window_bounds = array<i64: 2, 256, 36>}, {pipeline_mode = #tpu.pipeline_mode<synchronous>, transform_indices = @transform_1, window_bounds = array<i64: 36, 128>}, {pipeline_mode = #tpu.pipeline_mode<synchronous>, transform_indices = @transform_2, window_bounds = array<i64: 1, 128>}, {transform_indices = @transform_3, window_bounds = array<i64: 2, 128>}]} {
    %c0 = arith.constant 0 : index
    %c0_0 = arith.constant 0 : index
    %c0_1 = arith.constant 0 : index
    %0 = vector.load %arg1[%c0, %c0_0, %c0_1] : memref<2x256x36xf32, #tpu.memory_space<vmem>>, vector<2x256x36xf32>
    %1 = vector.shape_cast %0 : vector<2x256x36xf32> to vector<512x36xf32>
    %c0_2 = arith.constant 0 : index
    %c0_3 = arith.constant 0 : index
    %2 = vector.load %arg2[%c0_2, %c0_3] : memref<36x128xf32, #tpu.memory_space<vmem>>, vector<36x128xf32>
    %cst = arith.constant dense<0.000000e+00> : vector<512x128xf32>
    %3 = tpu.matmul %1, %2, %cst {dimension_numbers = #tpu.dot_dimension_numbers<[1], [0], [0], [1], [0, 0, 1, 1], [], []>} : vector<512x36xf32>, vector<36x128xf32>, vector<512x128xf32> -> vector<512x128xf32>
    %c0_4 = arith.constant 0 : index
    %c0_5 = arith.constant 0 : index
    %4 = vector.load %arg3[%c0_4, %c0_5] : memref<1x128xf32, #tpu.memory_space<vmem>>, vector<1x128xf32>
    %5 = vector.broadcast %4 : vector<1x128xf32> to vector<512x128xf32>
    %6 = arith.addf %3, %5 : vector<512x128xf32>
    %cst_6 = arith.constant 0.000000e+00 : f32
    %7 = vector.broadcast %cst_6 : f32 to vector<512x128xf32>
    %8 = arith.maximumf %6, %7 : vector<512x128xf32>
    %9 = vector.shape_cast %8 : vector<512x128xf32> to vector<2x256x128xf32>
    %cst_7 = arith.constant dense<0.000000e+00> : vector<2x128xf32>
    %10 = vector.multi_reduction <add>, %9, %cst_7 [1] : vector<2x256x128xf32> to vector<2x128xf32>
    %cst_8 = arith.constant 3.906250e-03 : f32
    %11 = vector.broadcast %cst_8 : f32 to vector<2x128xf32>
    %12 = arith.mulf %10, %11 : vector<2x128xf32>
    %c0_9 = arith.constant 0 : index
    %c0_10 = arith.constant 0 : index
    %13 = vector.load %arg4[%c0_9, %c0_10] : memref<2x128xf32, #tpu.memory_space<vmem>>, vector<2x128xf32>
    tpu.vector_store %arg4[%c0_9, %c0_10], %12 {strides = array<i32>} : memref<2x128xf32, #tpu.memory_space<vmem>>, vector<2x128xf32>,
    return
  }
  func.func @transform_0(%arg0: i32) -> (i32, i32, i32) {
    %c0_i32 = arith.constant 0 : i32
    %c0_i32_0 = arith.constant 0 : i32
    %c0_i32_1 = arith.constant 0 : i32
    return %arg0, %c0_i32, %c0_i32_0 : i32, i32, i32
  }
  func.func @transform_1(%arg0: i32) -> (i32, i32) {
    %c0_i32 = arith.constant 0 : i32
    %c0_i32_0 = arith.constant 0 : i32
    %c0_i32_1 = arith.constant 0 : i32
    return %c0_i32, %c0_i32_0 : i32, i32
  }
  func.func @transform_2(%arg0: i32) -> (i32, i32) {
    %c0_i32 = arith.constant 0 : i32
    %c0_i32_0 = arith.constant 0 : i32
    %c0_i32_1 = arith.constant 0 : i32
    return %c0_i32, %c0_i32_0 : i32, i32
  }
  func.func @transform_3(%arg0: i32) -> (i32, i32) {
    %c0_i32 = arith.constant 0 : i32
    %c0_i32_0 = arith.constant 0 : i32
    return %arg0, %c0_i32 : i32, i32
  }
}

module attributes {stable_mosaic.version = 11 : i64} {
  func.func @_head_kernel(%arg0: memref<2x128xf32, #tpu.memory_space<vmem>>, %arg1: memref<128x512xf32, #tpu.memory_space<vmem>>, %arg2: memref<1x512xf32, #tpu.memory_space<vmem>>, %arg3: memref<1x512xf32, #tpu.memory_space<vmem>>, %arg4: memref<1x512xf32, #tpu.memory_space<vmem>>, %arg5: memref<512x128xf32, #tpu.memory_space<vmem>>, %arg6: memref<1x128xf32, #tpu.memory_space<vmem>>, %arg7: memref<1x128xf32, #tpu.memory_space<vmem>>, %arg8: memref<2x128xf32, #tpu.memory_space<vmem>>) attributes {dimension_semantics = [], scalar_prefetch = 0 : i64, scratch_operands = 0 : i64, tpu.core_type = #tpu.core_type<tc>} {
    %c0 = arith.constant 0 : index
    %c0_0 = arith.constant 0 : index
    %0 = vector.load %arg0[%c0, %c0_0] : memref<2x128xf32, #tpu.memory_space<vmem>>, vector<2x128xf32>
    %c0_1 = arith.constant 0 : index
    %c0_2 = arith.constant 0 : index
    %1 = vector.load %arg1[%c0_1, %c0_2] : memref<128x512xf32, #tpu.memory_space<vmem>>, vector<128x512xf32>
    %cst = arith.constant dense<0.000000e+00> : vector<2x512xf32>
    %2 = tpu.matmul %0, %1, %cst {dimension_numbers = #tpu.dot_dimension_numbers<[1], [0], [0], [1], [0, 0, 1, 1], [], []>} : vector<2x128xf32>, vector<128x512xf32>, vector<2x512xf32> -> vector<2x512xf32>
    %c0_3 = arith.constant 0 : index
    %c0_4 = arith.constant 0 : index
    %3 = vector.load %arg2[%c0_3, %c0_4] : memref<1x512xf32, #tpu.memory_space<vmem>>, vector<1x512xf32>
    %4 = vector.broadcast %3 : vector<1x512xf32> to vector<2x512xf32>
    %5 = arith.addf %2, %4 : vector<2x512xf32>
    %cst_5 = arith.constant dense<0.000000e+00> : vector<512xf32>
    %6 = vector.multi_reduction <add>, %5, %cst_5 [0] : vector<2x512xf32> to vector<512xf32>
    %7 = vector.shape_cast %6 : vector<512xf32> to vector<1x512xf32>
    %cst_6 = arith.constant 2.000000e+00 : f32
    %8 = vector.broadcast %cst_6 : f32 to vector<1x512xf32>
    %9 = arith.divf %7, %8 : vector<1x512xf32>
    %10 = vector.broadcast %9 : vector<1x512xf32> to vector<2x512xf32>
    %11 = arith.subf %5, %10 : vector<2x512xf32>
    %12 = arith.mulf %11, %11 : vector<2x512xf32>
    %cst_7 = arith.constant dense<0.000000e+00> : vector<512xf32>
    %13 = vector.multi_reduction <add>, %12, %cst_7 [0] : vector<2x512xf32> to vector<512xf32>
    %14 = vector.shape_cast %13 : vector<512xf32> to vector<1x512xf32>
    %cst_8 = arith.constant 2.000000e+00 : f32
    %15 = vector.broadcast %cst_8 : f32 to vector<1x512xf32>
    %16 = arith.divf %14, %15 : vector<1x512xf32>
    %17 = vector.broadcast %9 : vector<1x512xf32> to vector<2x512xf32>
    %18 = arith.subf %5, %17 : vector<2x512xf32>
    %cst_9 = arith.constant 9.99999974E-6 : f32
    %19 = vector.broadcast %cst_9 : f32 to vector<1x512xf32>
    %20 = arith.addf %16, %19 : vector<1x512xf32>
    %21 = math.rsqrt %20 : vector<1x512xf32>
    %22 = vector.broadcast %21 : vector<1x512xf32> to vector<2x512xf32>
    %23 = arith.mulf %18, %22 : vector<2x512xf32>
    %c0_10 = arith.constant 0 : index
    %c0_11 = arith.constant 0 : index
    %24 = vector.load %arg3[%c0_10, %c0_11] : memref<1x512xf32, #tpu.memory_space<vmem>>, vector<1x512xf32>
    %25 = vector.broadcast %24 : vector<1x512xf32> to vector<2x512xf32>
    %26 = arith.mulf %23, %25 : vector<2x512xf32>
    %c0_12 = arith.constant 0 : index
    %c0_13 = arith.constant 0 : index
    %27 = vector.load %arg4[%c0_12, %c0_13] : memref<1x512xf32, #tpu.memory_space<vmem>>, vector<1x512xf32>
    %28 = vector.broadcast %27 : vector<1x512xf32> to vector<2x512xf32>
    %29 = arith.addf %26, %28 : vector<2x512xf32>
    %cst_14 = arith.constant 0.000000e+00 : f32
    %30 = vector.broadcast %cst_14 : f32 to vector<2x512xf32>
    %31 = arith.maximumf %29, %30 : vector<2x512xf32>
    %c0_15 = arith.constant 0 : index
    %c0_16 = arith.constant 0 : index
    %32 = vector.load %arg5[%c0_15, %c0_16] : memref<512x128xf32, #tpu.memory_space<vmem>>, vector<512x128xf32>
    %cst_17 = arith.constant dense<0.000000e+00> : vector<2x128xf32>
    %33 = tpu.matmul %31, %32, %cst_17 {dimension_numbers = #tpu.dot_dimension_numbers<[1], [0], [0], [1], [0, 0, 1, 1], [], []>} : vector<2x512xf32>, vector<512x128xf32>, vector<2x128xf32> -> vector<2x128xf32>
    %c0_18 = arith.constant 0 : index
    %c0_19 = arith.constant 0 : index
    %34 = vector.load %arg6[%c0_18, %c0_19] : memref<1x128xf32, #tpu.memory_space<vmem>>, vector<1x128xf32>
    %35 = vector.broadcast %34 : vector<1x128xf32> to vector<2x128xf32>
    %36 = arith.addf %33, %35 : vector<2x128xf32>
    %cst_20 = arith.constant dense<0.000000e+00> : vector<128xf32>
    %37 = vector.multi_reduction <add>, %36, %cst_20 [0] : vector<2x128xf32> to vector<128xf32>
    %38 = vector.shape_cast %37 : vector<128xf32> to vector<1x128xf32>
    %cst_21 = arith.constant 2.000000e+00 : f32
    %39 = vector.broadcast %cst_21 : f32 to vector<1x128xf32>
    %40 = arith.divf %38, %39 : vector<1x128xf32>
    %41 = vector.broadcast %40 : vector<1x128xf32> to vector<2x128xf32>
    %42 = arith.subf %36, %41 : vector<2x128xf32>
    %43 = arith.mulf %42, %42 : vector<2x128xf32>
    %cst_22 = arith.constant dense<0.000000e+00> : vector<128xf32>
    %44 = vector.multi_reduction <add>, %43, %cst_22 [0] : vector<2x128xf32> to vector<128xf32>
    %45 = vector.shape_cast %44 : vector<128xf32> to vector<1x128xf32>
    %cst_23 = arith.constant 2.000000e+00 : f32
    %46 = vector.broadcast %cst_23 : f32 to vector<1x128xf32>
    %47 = arith.divf %45, %46 : vector<1x128xf32>
    %48 = vector.broadcast %40 : vector<1x128xf32> to vector<2x128xf32>
    %49 = arith.subf %36, %48 : vector<2x128xf32>
    %cst_24 = arith.constant 9.99999974E-6 : f32
    %50 = vector.broadcast %cst_24 : f32 to vector<1x128xf32>
    %51 = arith.addf %47, %50 : vector<1x128xf32>
    %52 = math.rsqrt %51 : vector<1x128xf32>
    %53 = vector.broadcast %52 : vector<1x128xf32> to vector<2x128xf32>
    %54 = arith.mulf %49, %53 : vector<2x128xf32>
    %c0_25 = arith.constant 0 : index
    %c0_26 = arith.constant 0 : index
    %55 = vector.load %arg7[%c0_25, %c0_26] : memref<1x128xf32, #tpu.memory_space<vmem>>, vector<1x128xf32>
    %56 = vector.broadcast %55 : vector<1x128xf32> to vector<2x128xf32>
    %57 = arith.mulf %54, %56 : vector<2x128xf32>
    %c0_27 = arith.constant 0 : index
    %c0_28 = arith.constant 0 : index
    %58 = vector.load %arg8[%c0_27, %c0_28] : memref<2x128xf32, #tpu.memory_space<vmem>>, vector<2x128xf32>
    tpu.vector_store %arg8[%c0_27, %c0_28], %57 {strides = array<i32>} : memref<2x128xf32, #tpu.memory_space<vmem>>, vector<2x128xf32>,
    return
  }
}

</mosaic_0001>

<llo_original>
// kernel: simclr_forward.2
$region0: #{simclr_forward.2}
  #allocation0 [shape = 'u32[]', space=smem, size = 0x4, offset = 0x4, fixed_abs, tag = 'smem constant byte address 0x4 - core index']
  #allocation1 [shape = 'u32[144,128]{1,0:T(1,128)}', space=vmem, size = 0x12000, scoped, tag = 'internal scratch']
  %s0 = inlined_call_operand.vmem [shape: f32[2,256,36], index: 0, kind: input, shape index: {}]
  %s1 = inlined_call_operand.vmem [shape: f32[36,128], index: 1, kind: input, shape index: {}]
  %s2 = inlined_call_operand.vmem [shape: f32[1,128], index: 2, kind: input, shape index: {}]
  %s3 = inlined_call_operand.vmem [shape: f32[2,128], index: 3, kind: output, shape index: {}]
  %s4 = sld [smem:[#allocation0]]
  $region22: #{simclr_forward.2} parent=0
    _
  %s6 = ssub.s32 1, %s4
  %s7 = scalar_select 0, %s6, %s4
  // Predicated region
  $region2: #{simclr_forward.2} parent=0 // pred_check
    _
  $region3: #{simclr_forward.2} parent=0 // pred_check_branch
    %9 = sbr.rel (0) target = $region5
  $region4: #{simclr_forward.2} parent=0 // pred_region
    _
  $region5: #{simclr_forward.2} parent=0 // pred_fallthru
    _
  // Predicated region
  $region6: #{simclr_forward.2} parent=0 // pred_check
    _
  $region7: #{simclr_forward.2} parent=0 // pred_check_branch
    %11 = sbr.rel (0) target = $region9
  $region8: #{simclr_forward.2} parent=0 // pred_region
    _
  $region9: #{simclr_forward.2} parent=0 // pred_fallthru
    _
  // Predicated region
  $region10: #{simclr_forward.2} parent=0 // pred_check
    _
  $region11: #{simclr_forward.2} parent=0 // pred_check_branch
    %13 = sbr.rel (0) target = $region13
  $region12: #{simclr_forward.2} parent=0 // pred_region
    _
  $region13: #{simclr_forward.2} parent=0 // pred_fallthru
    _
  %v14 = vld [vmem:[%s0] sm:$0xff]
  %v15 = vld [vmem:[%s0 + $0x8] sm:$0xff]
  %v16 = vld [vmem:[%s0 + $0x10] sm:$0xff]
  %v17 = vld [vmem:[%s0 + $0x18] sm:$0xff]
  %v18 = vld [vmem:[%s0 + $0x20] sm:$0xff]
  %v19 = vld [vmem:[%s0 + $0x28] sm:$0xff]
  %v20 = vld [vmem:[%s0 + $0x30] sm:$0xff]
  %v21 = vld [vmem:[%s0 + $0x38] sm:$0xff]
  %v22 = vld [vmem:[%s0 + $0x40] sm:$0xff]
  %v23 = vld [vmem:[%s0 + $0x48] sm:$0xff]
  %v24 = vld [vmem:[%s0 + $0x50] sm:$0xff]
  %v25 = vld [vmem:[%s0 + $0x58] sm:$0xff]
  %v26 = vld [vmem:[%s0 + $0x60] sm:$0xff]
  %v27 = vld [vmem:[%s0 + $0x68] sm:$0xff]
  %v28 = vld [vmem:[%s0 + $0x70] sm:$0xff]
  %v29 = vld [vmem:[%s0 + $0x78] sm:$0xff]
  %v30 = vld [vmem:[%s0 + $0x80] sm:$0xff]
  %v31 = vld [vmem:[%s0 + $0x88] sm:$0xff]
  %v32 = vld [vmem:[%s0 + $0x90] sm:$0xff]
  %v33 = vld [vmem:[%s0 + $0x98] sm:$0xff]
  %v34 = vld [vmem:[%s0 + $0xa0] sm:$0xff]
  %v35 = vld [vmem:[%s0 + $0xa8] sm:$0xff]
  %v36 = vld [vmem:[%s0 + $0xb0] sm:$0xff]
  %v37 = vld [vmem:[%s0 + $0xb8] sm:$0xff]
  %v38 = vld [vmem:[%s0 + $0xc0] sm:$0xff]
  %v39 = vld [vmem:[%s0 + $0xc8] sm:$0xff]
  %v40 = vld [vmem:[%s0 + $0xd0] sm:$0xff]
  %v41 = vld [vmem:[%s0 + $0xd8] sm:$0xff]
  %v42 = vld [vmem:[%s0 + $0xe0] sm:$0xff]
  %v43 = vld [vmem:[%s0 + $0xe8] sm:$0xff]
  %v44 = vld [vmem:[%s0 + $0xf0] sm:$0xff]
  %v45 = vld [vmem:[%s0 + $0xf8] sm:$0xff]
  %v46 = vld [vmem:[%s0 + $0x100] sm:$0xff]
  %v47 = vld [vmem:[%s0 + $0x108] sm:$0xff]
  %v48 = vld [vmem:[%s0 + $0x110] sm:$0xff]
  %v49 = vld [vmem:[%s0 + $0x118] sm:$0xff]
  %v50 = vld [vmem:[%s0 + $0x120] sm:$0xff]
  %v51 = vld [vmem:[%s0 + $0x128] sm:$0xff]
  %v52 = vld [vmem:[%s0 + $0x130] sm:$0xff]
  %v53 = vld [vmem:[%s0 + $0x138] sm:$0xff]
  %v54 = vld [vmem:[%s0 + $0x140] sm:$0xff]
  %v55 = vld [vmem:[%s0 + $0x148] sm:$0xff]
  %v56 = vld [vmem:[%s0 + $0x150] sm:$0xff]
  %v57 = vld [vmem:[%s0 + $0x158] sm:$0xff]
  %v58 = vld [vmem:[%s0 + $0x160] sm:$0xff]
  %v59 = vld [vmem:[%s0 + $0x168] sm:$0xff]
  %v60 = vld [vmem:[%s0 + $0x170] sm:$0xff]
  %v61 = vld [vmem:[%s0 + $0x178] sm:$0xff]
  %v62 = vld [vmem:[%s0 + $0x180] sm:$0xff]
  %v63 = vld [vmem:[%s0 + $0x188] sm:$0xff]
  %v64 = vld [vmem:[%s0 + $0x190] sm:$0xff]
  %v65 = vld [vmem:[%s0 + $0x198] sm:$0xff]
  %v66 = vld [vmem:[%s0 + $0x1a0] sm:$0xff]
  %v67 = vld [vmem:[%s0 + $0x1a8] sm:$0xff]
  %v68 = vld [vmem:[%s0 + $0x1b0] sm:$0xff]
  %v69 = vld [vmem:[%s0 + $0x1b8] sm:$0xff]
  %v70 = vld [vmem:[%s0 + $0x1c0] sm:$0xff]
  %v71 = vld [vmem:[%s0 + $0x1c8] sm:$0xff]
  %v72 = vld [vmem:[%s0 + $0x1d0] sm:$0xff]
  %v73 = vld [vmem:[%s0 + $0x1d8] sm:$0xff]
  %v74 = vld [vmem:[%s0 + $0x1e0] sm:$0xff]
  %v75 = vld [vmem:[%s0 + $0x1e8] sm:$0xff]
  %v76 = vld [vmem:[%s0 + $0x1f0] sm:$0xff]
  %v77 = vld [vmem:[%s0 + $0x1f8] sm:$0xff]
  %v78 = vld [vmem:[%s1] sm:$0xff]
  %v79 = vld [vmem:[%s1 + $0x8] sm:$0xff]
  %v80 = vld [vmem:[%s1 + $0x10] sm:$0xff]
  %v81 = vld [vmem:[%s1 + $0x18] sm:$0xff]
  %v82 = vld [vmem:[%s1 + $0x20] sm:$0xf]
  %v83 = vld [vmem:[%s2] sm:$0x1]
  %v85 = vlaneseq
  %v86 = vshrl.u32 %v85, 7
  %v87 = vsub.s32 0, %v86
  %v88 = vrot.slane %v83, %v87
  %vm90 = vcmask 293888
  %v92 = vsel %vm90, %v14, 0
  %v95 = vsel %vm90, %v15, 0
  %v98 = vsel %vm90, %v16, 0
  %v101 = vsel %vm90, %v17, 0
  %v104 = vsel %vm90, %v18, 0
  %v107 = vsel %vm90, %v19, 0
  %v110 = vsel %vm90, %v20, 0
  %v113 = vsel %vm90, %v21, 0
  %v116 = vsel %vm90, %v22, 0
  %v119 = vsel %vm90, %v23, 0
  %v122 = vsel %vm90, %v24, 0
  %v125 = vsel %vm90, %v25, 0
  %v128 = vsel %vm90, %v26, 0
  %v131 = vsel %vm90, %v27, 0
  %v134 = vsel %vm90, %v28, 0
  %v137 = vsel %vm90, %v29, 0
  %v140 = vsel %vm90, %v30, 0
  %v143 = vsel %vm90, %v31, 0
  %v146 = vsel %vm90, %v32, 0
  %v149 = vsel %vm90, %v33, 0
  %v152 = vsel %vm90, %v34, 0
  %v155 = vsel %vm90, %v35, 0
  %v158 = vsel %vm90, %v36, 0
  %v161 = vsel %vm90, %v37, 0
  %v164 = vsel %vm90, %v38, 0
  %v167 = vsel %vm90, %v39, 0
  %v170 = vsel %vm90, %v40, 0
  %v173 = vsel %vm90, %v41, 0
  %v176 = vsel %vm90, %v42, 0
  %v179 = vsel %vm90, %v43, 0
  %v182 = vsel %vm90, %v44, 0
  %v185 = vsel %vm90, %v45, 0
  %v188 = vsel %vm90, %v46, 0
  %v191 = vsel %vm90, %v47, 0
  %v194 = vsel %vm90, %v48, 0
  %v197 = vsel %vm90, %v49, 0
  %v200 = vsel %vm90, %v50, 0
  %v203 = vsel %vm90, %v51, 0
  %v206 = vsel %vm90, %v52, 0
  %v209 = vsel %vm90, %v53, 0
  %v212 = vsel %vm90, %v54, 0
  %v215 = vsel %vm90, %v55, 0
  %v218 = vsel %vm90, %v56, 0
  %v221 = vsel %vm90, %v57, 0
  %v224 = vsel %vm90, %v58, 0
  %v227 = vsel %vm90, %v59, 0
  %v230 = vsel %vm90, %v60, 0
  %v233 = vsel %vm90, %v61, 0
  %v236 = vsel %vm90, %v62, 0
  %v239 = vsel %vm90, %v63, 0
  %v242 = vsel %vm90, %v64, 0
  %v245 = vsel %vm90, %v65, 0
  %v248 = vsel %vm90, %v66, 0
  %v251 = vsel %vm90, %v67, 0
  %v254 = vsel %vm90, %v68, 0
  %v257 = vsel %vm90, %v69, 0
  %v260 = vsel %vm90, %v70, 0
  %v263 = vsel %vm90, %v71, 0
  %v266 = vsel %vm90, %v72, 0
  %v269 = vsel %vm90, %v73, 0
  %v272 = vsel %vm90, %v74, 0
  %v275 = vsel %vm90, %v75, 0
  %v278 = vsel %vm90, %v76, 0
  %v281 = vsel %vm90, %v77, 0
  %vm283 = vcmask 1043456
  %v285 = vsel %vm283, %v82, 0
  %287 = vmatprep.subr.mxu0 0.0
  %288 = vmatpush1.msra.mxu0 0.0
  %289 = vmatprep.subr.mxu0 0.0
  %290 = vmatpush1.msra.mxu0 0.0
  %291 = vmatprep.subr.mxu0 0.0
  %292 = vmatpush1.msra.mxu0 0.0
  %293 = vmatprep.subr.mxu0 0.0
  %294 = vmatpush1.msra.mxu0 0.0
  %295 = vmatprep.subr.mxu0 0.0
  %296 = vmatpush1.msra.mxu0 0.0
  %297 = vmatprep.subr.mxu0 0.0
  %298 = vmatpush1.msra.mxu0 0.0
  %299 = vmatprep.subr.mxu0 0.0
  %300 = vmatpush1.msra.mxu0 0.0
  %301 = vmatprep.subr.mxu0 0.0
  %302 = vmatpush1.msra.mxu0 0.0
  %303 = vmatprep.subr.mxu0 0.0
  %304 = vmatpush1.msra.mxu0 0.0
  %305 = vmatprep.subr.mxu0 0.0
  %306 = vmatpush1.msra.mxu0 0.0
  %307 = vmatprep.subr.mxu0 0.0
  %308 = vmatpush1.msra.mxu0 0.0
  %309 = vmatprep.subr.mxu0 0.0
  %310 = vmatpush1.msra.mxu0 %v285
  %311 = vmatprep.subr.mxu0 0.0
  %312 = vmatpush1.msra.mxu0 %v81
  %313 = vmatprep.subr.mxu0 0.0
  %314 = vmatpush1.msra.mxu0 %v80
  %315 = vmatprep.subr.mxu0 0.0
  %316 = vmatpush1.msra.mxu0 %v79
  %317 = vmatprep.subr.mxu0 0.0
  %318 = vmatpush1.msra.mxu0 %v78
  %319 = vmatprep.subr.mxu0 0.0
  %320 = vmatpush2.msra.mxu0 0.0
  %321 = vmatprep.subr.mxu0 0.0
  %322 = vmatpush2.msra.mxu0 0.0
  %323 = vmatprep.subr.mxu0 0.0
  %324 = vmatpush2.msra.mxu0 0.0
  %325 = vmatprep.subr.mxu0 0.0
  %326 = vmatpush2.msra.mxu0 0.0
  %327 = vmatprep.subr.mxu0 0.0
  %328 = vmatpush2.msra.mxu0 0.0
  %329 = vmatprep.subr.mxu0 0.0
  %330 = vmatpush2.msra.mxu0 0.0
  %331 = vmatprep.subr.mxu0 0.0
  %332 = vmatpush2.msra.mxu0 0.0
  %333 = vmatprep.subr.mxu0 0.0
  %334 = vmatpush2.msra.mxu0 0.0
  %335 = vmatprep.subr.mxu0 0.0
  %336 = vmatpush2.msra.mxu0 0.0
  %337 = vmatprep.subr.mxu0 0.0
  %338 = vmatpush2.msra.mxu0 0.0
  %339 = vmatprep.subr.mxu0 0.0
  %340 = vmatpush2.msra.mxu0 0.0
  %341 = vmatprep.subr.mxu0 0.0
  %342 = vmatpush2.msra.mxu0 0.0
  %343 = vmatprep.subr.mxu0 0.0
  %344 = vmatpush2.msra.mxu0 0.0
  %345 = vmatprep.subr.mxu0 0.0
  %346 = vmatpush2.msra.mxu0 0.0
  %347 = vmatprep.subr.mxu0 0.0
  %348 = vmatpush2.msra.mxu0 0.0
  %349 = vmatprep.subr.mxu0 0.0
  %350 = vmatpush2.msra.mxu0 0.0
  %351 = vmatprep.mubr.f32.mxu0 0.0
  %352 = vmatmul.mubr.f32.gmra.mxu0 %v92
  %v353 = vpop.f32.mrf.mxu0
  %v354 = vadd.f32 %v88, %v353
  %v355 = vpop.f32.mrf.mxu0
  %356 = vmatprep.mubr.f32.mxu0 0.0
  %357 = vmatmul.mubr.f32.gmra.mxu0 %v95
  %v358 = vpop.f32.mrf.mxu0
  %v359 = vadd.f32 %v88, %v358
  %v360 = vpop.f32.mrf.mxu0
  %361 = vmatprep.mubr.f32.mxu0 0.0
  %362 = vmatmul.mubr.f32.gmra.mxu0 %v98
  %v363 = vpop.f32.mrf.mxu0
  %v364 = vadd.f32 %v88, %v363
  %v365 = vpop.f32.mrf.mxu0
  %366 = vmatprep.mubr.f32.mxu0 0.0
  %367 = vmatmul.mubr.f32.gmra.mxu0 %v101
  %v368 = vpop.f32.mrf.mxu0
  %v369 = vadd.f32 %v88, %v368
  %v370 = vpop.f32.mrf.mxu0
  %371 = vmatprep.mubr.f32.mxu0 0.0
  %372 = vmatmul.mubr.f32.gmra.mxu0 %v104
  %v373 = vpop.f32.mrf.mxu0
  %v374 = vadd.f32 %v88, %v373
  %v375 = vpop.f32.mrf.mxu0
  %376 = vmatprep.mubr.f32.mxu0 0.0
  %377 = vmatmul.mubr.f32.gmra.mxu0 %v107
  %v378 = vpop.f32.mrf.mxu0
  %v379 = vadd.f32 %v88, %v378
  %v380 = vpop.f32.mrf.mxu0
  %381 = vmatprep.mubr.f32.mxu0 0.0
  %382 = vmatmul.mubr.f32.gmra.mxu0 %v110
  %v383 = vpop.f32.mrf.mxu0
  %v384 = vadd.f32 %v88, %v383
  %v385 = vpop.f32.mrf.mxu0
  %386 = vmatprep.mubr.f32.mxu0 0.0
  %387 = vmatmul.mubr.f32.gmra.mxu0 %v113
  %v388 = vpop.f32.mrf.mxu0
  %v389 = vadd.f32 %v88, %v388
  %v390 = vpop.f32.mrf.mxu0
  %391 = vmatprep.mubr.f32.mxu0 0.0
  %392 = vmatmul.mubr.f32.gmra.mxu0 %v116
  %v393 = vpop.f32.mrf.mxu0
  %v394 = vadd.f32 %v88, %v393
  %v395 = vpop.f32.mrf.mxu0
  %396 = vmatprep.mubr.f32.mxu0 0.0
  %397 = vmatmul.mubr.f32.gmra.mxu0 %v119
  %v398 = vpop.f32.mrf.mxu0
  %v399 = vadd.f32 %v88, %v398
  %v400 = vpop.f32.mrf.mxu0
  %401 = vmatprep.mubr.f32.mxu0 0.0
  %402 = vmatmul.mubr.f32.gmra.mxu0 %v122
  %v403 = vpop.f32.mrf.mxu0
  %v404 = vadd.f32 %v88, %v403
  %v405 = vpop.f32.mrf.mxu0
  %406 = vmatprep.mubr.f32.mxu0 0.0
  %407 = vmatmul.mubr.f32.gmra.mxu0 %v125
  %v408 = vpop.f32.mrf.mxu0
  %v409 = vadd.f32 %v88, %v408
  %v410 = vpop.f32.mrf.mxu0
  %411 = vmatprep.mubr.f32.mxu0 0.0
  %412 = vmatmul.mubr.f32.gmra.mxu0 %v128
  %v413 = vpop.f32.mrf.mxu0
  %v414 = vadd.f32 %v88, %v413
  %v415 = vpop.f32.mrf.mxu0
  %416 = vmatprep.mubr.f32.mxu0 0.0
  %417 = vmatmul.mubr.f32.gmra.mxu0 %v131
  %v418 = vpop.f32.mrf.mxu0
  %v419 = vadd.f32 %v88, %v418
  %v420 = vpop.f32.mrf.mxu0
  %421 = vmatprep.mubr.f32.mxu0 0.0
  %422 = vmatmul.mubr.f32.gmra.mxu0 %v134
  %v423 = vpop.f32.mrf.mxu0
  %v424 = vadd.f32 %v88, %v423
  %v425 = vpop.f32.mrf.mxu0
  %426 = vmatprep.mubr.f32.mxu0 0.0
  %427 = vmatmul.mubr.f32.gmra.mxu0 %v137
  %v428 = vpop.f32.mrf.mxu0
  %v429 = vadd.f32 %v88, %v428
  %v430 = vpop.f32.mrf.mxu0
  %431 = vmatprep.mubr.f32.mxu0 0.0
  %432 = vmatmul.mubr.f32.gmra.mxu0 %v140
  %v433 = vpop.f32.mrf.mxu0
  %v434 = vadd.f32 %v88, %v433
  %v435 = vpop.f32.mrf.mxu0
  %436 = vmatprep.mubr.f32.mxu0 0.0
  %437 = vmatmul.mubr.f32.gmra.mxu0 %v143
  %v438 = vpop.f32.mrf.mxu0
  %v439 = vadd.f32 %v88, %v438
  %v440 = vpop.f32.mrf.mxu0
  %441 = vmatprep.mubr.f32.mxu0 0.0
  %442 = vmatmul.mubr.f32.gmra.mxu0 %v146
  %v443 = vpop.f32.mrf.mxu0
  %v444 = vadd.f32 %v88, %v443
  %v445 = vpop.f32.mrf.mxu0
  %446 = vmatprep.mubr.f32.mxu0 0.0
  %447 = vmatmul.mubr.f32.gmra.mxu0 %v149
  %v448 = vpop.f32.mrf.mxu0
  %v449 = vadd.f32 %v88, %v448
  %v450 = vpop.f32.mrf.mxu0
  %451 = vmatprep.mubr.f32.mxu0 0.0
  %452 = vmatmul.mubr.f32.gmra.mxu0 %v152
  %v453 = vpop.f32.mrf.mxu0
  %v454 = vadd.f32 %v88, %v453
  %v455 = vpop.f32.mrf.mxu0
  %456 = vmatprep.mubr.f32.mxu0 0.0
  %457 = vmatmul.mubr.f32.gmra.mxu0 %v155
  %v458 = vpop.f32.mrf.mxu0
  %v459 = vadd.f32 %v88, %v458
  %v460 = vpop.f32.mrf.mxu0
  %461 = vmatprep.mubr.f32.mxu0 0.0
  %462 = vmatmul.mubr.f32.gmra.mxu0 %v158
  %v463 = vpop.f32.mrf.mxu0
  %v464 = vadd.f32 %v88, %v463
  %v465 = vpop.f32.mrf.mxu0
  %466 = vmatprep.mubr.f32.mxu0 0.0
  %467 = vmatmul.mubr.f32.gmra.mxu0 %v161
  %v468 = vpop.f32.mrf.mxu0
  %v469 = vadd.f32 %v88, %v468
  %v470 = vpop.f32.mrf.mxu0
  %471 = vmatprep.mubr.f32.mxu0 0.0
  %472 = vmatmul.mubr.f32.gmra.mxu0 %v164
  %v473 = vpop.f32.mrf.mxu0
  %v474 = vadd.f32 %v88, %v473
  %v475 = vpop.f32.mrf.mxu0
  %476 = vmatprep.mubr.f32.mxu0 0.0
  %477 = vmatmul.mubr.f32.gmra.mxu0 %v167
  %v478 = vpop.f32.mrf.mxu0
  %v479 = vadd.f32 %v88, %v478
  %v480 = vpop.f32.mrf.mxu0
  %481 = vmatprep.mubr.f32.mxu0 0.0
  %482 = vmatmul.mubr.f32.gmra.mxu0 %v170
  %v483 = vpop.f32.mrf.mxu0
  %v484 = vadd.f32 %v88, %v483
  %v485 = vpop.f32.mrf.mxu0
  %486 = vmatprep.mubr.f32.mxu0 0.0
  %487 = vmatmul.mubr.f32.gmra.mxu0 %v173
  %v488 = vpop.f32.mrf.mxu0
  %v489 = vadd.f32 %v88, %v488
  %v490 = vpop.f32.mrf.mxu0
  %491 = vmatprep.mubr.f32.mxu0 0.0
  %492 = vmatmul.mubr.f32.gmra.mxu0 %v176
  %v493 = vpop.f32.mrf.mxu0
  %v494 = vadd.f32 %v88, %v493
  %v495 = vpop.f32.mrf.mxu0
  %496 = vmatprep.mubr.f32.mxu0 0.0
  %497 = vmatmul.mubr.f32.gmra.mxu0 %v179
  %v498 = vpop.f32.mrf.mxu0
  %v499 = vadd.f32 %v88, %v498
  %v500 = vpop.f32.mrf.mxu0
  %501 = vmatprep.mubr.f32.mxu0 0.0
  %502 = vmatmul.mubr.f32.gmra.mxu0 %v182
  %v503 = vpop.f32.mrf.mxu0
  %v504 = vadd.f32 %v88, %v503
  %v505 = vpop.f32.mrf.mxu0
  %506 = vmatprep.mubr.f32.mxu0 0.0
  %507 = vmatmul.mubr.f32.gmra.mxu0 %v185
  %v508 = vpop.f32.mrf.mxu0
  %v509 = vadd.f32 %v88, %v508
  %v510 = vpop.f32.mrf.mxu0
  %511 = vmatprep.mubr.f32.mxu0 0.0
  %512 = vmatmul.mubr.f32.gmra.mxu0 %v188
  %v513 = vpop.f32.mrf.mxu0
  %v514 = vadd.f32 %v88, %v513
  %v515 = vpop.f32.mrf.mxu0
  %516 = vmatprep.mubr.f32.mxu0 0.0
  %517 = vmatmul.mubr.f32.gmra.mxu0 %v191
  %v518 = vpop.f32.mrf.mxu0
  %v519 = vadd.f32 %v88, %v518
  %v520 = vpop.f32.mrf.mxu0
  %521 = vmatprep.mubr.f32.mxu0 0.0
  %522 = vmatmul.mubr.f32.gmra.mxu0 %v194
  %v523 = vpop.f32.mrf.mxu0
  %v524 = vadd.f32 %v88, %v523
  %v525 = vpop.f32.mrf.mxu0
  %526 = vmatprep.mubr.f32.mxu0 0.0
  %527 = vmatmul.mubr.f32.gmra.mxu0 %v197
  %v528 = vpop.f32.mrf.mxu0
  %v529 = vadd.f32 %v88, %v528
  %v530 = vpop.f32.mrf.mxu0
  %531 = vmatprep.mubr.f32.mxu0 0.0
  %532 = vmatmul.mubr.f32.gmra.mxu0 %v200
  %v533 = vpop.f32.mrf.mxu0
  %v534 = vadd.f32 %v88, %v533
  %v535 = vpop.f32.mrf.mxu0
  %536 = vmatprep.mubr.f32.mxu0 0.0
  %537 = vmatmul.mubr.f32.gmra.mxu0 %v203
  %v538 = vpop.f32.mrf.mxu0
  %v539 = vadd.f32 %v88, %v538
  %v540 = vpop.f32.mrf.mxu0
  %541 = vmatprep.mubr.f32.mxu0 0.0
  %542 = vmatmul.mubr.f32.gmra.mxu0 %v206
  %v543 = vpop.f32.mrf.mxu0
  %v544 = vadd.f32 %v88, %v543
  %v545 = vpop.f32.mrf.mxu0
  %546 = vmatprep.mubr.f32.mxu0 0.0
  %547 = vmatmul.mubr.f32.gmra.mxu0 %v209
  %v548 = vpop.f32.mrf.mxu0
  %v549 = vadd.f32 %v88, %v548
  %v550 = vpop.f32.mrf.mxu0
  %551 = vmatprep.mubr.f32.mxu0 0.0
  %552 = vmatmul.mubr.f32.gmra.mxu0 %v212
  %v553 = vpop.f32.mrf.mxu0
  %v554 = vadd.f32 %v88, %v553
  %v555 = vpop.f32.mrf.mxu0
  %556 = vmatprep.mubr.f32.mxu0 0.0
  %557 = vmatmul.mubr.f32.gmra.mxu0 %v215
  %v558 = vpop.f32.mrf.mxu0
  %v559 = vadd.f32 %v88, %v558
  %v560 = vpop.f32.mrf.mxu0
  %561 = vmatprep.mubr.f32.mxu0 0.0
  %562 = vmatmul.mubr.f32.gmra.mxu0 %v218
  %v563 = vpop.f32.mrf.mxu0
  %v564 = vadd.f32 %v88, %v563
  %v565 = vpop.f32.mrf.mxu0
  %566 = vmatprep.mubr.f32.mxu0 0.0
  %567 = vmatmul.mubr.f32.gmra.mxu0 %v221
  %v568 = vpop.f32.mrf.mxu0
  %v569 = vadd.f32 %v88, %v568
  %v570 = vpop.f32.mrf.mxu0
  %571 = vmatprep.mubr.f32.mxu0 0.0
  %572 = vmatmul.mubr.f32.gmra.mxu0 %v224
  %v573 = vpop.f32.mrf.mxu0
  %v574 = vadd.f32 %v88, %v573
  %v575 = vpop.f32.mrf.mxu0
  %576 = vmatprep.mubr.f32.mxu0 0.0
  %577 = vmatmul.mubr.f32.gmra.mxu0 %v227
  %v578 = vpop.f32.mrf.mxu0
  %v579 = vadd.f32 %v88, %v578
  %v580 = vpop.f32.mrf.mxu0
  %581 = vmatprep.mubr.f32.mxu0 0.0
  %582 = vmatmul.mubr.f32.gmra.mxu0 %v230
  %v583 = vpop.f32.mrf.mxu0
  %v584 = vadd.f32 %v88, %v583
  %v585 = vpop.f32.mrf.mxu0
  %586 = vmatprep.mubr.f32.mxu0 0.0
  %587 = vmatmul.mubr.f32.gmra.mxu0 %v233
  %v588 = vpop.f32.mrf.mxu0
  %v589 = vadd.f32 %v88, %v588
  %v590 = vpop.f32.mrf.mxu0
  %591 = vmatprep.mubr.f32.mxu0 0.0
  %592 = vmatmul.mubr.f32.gmra.mxu0 %v236
  %v593 = vpop.f32.mrf.mxu0
  %v594 = vadd.f32 %v88, %v593
  %v595 = vpop.f32.mrf.mxu0
  %596 = vmatprep.mubr.f32.mxu0 0.0
  %597 = vmatmul.mubr.f32.gmra.mxu0 %v239
  %v598 = vpop.f32.mrf.mxu0
  %v599 = vadd.f32 %v88, %v598
  %v600 = vpop.f32.mrf.mxu0
  %601 = vmatprep.mubr.f32.mxu0 0.0
  %602 = vmatmul.mubr.f32.gmra.mxu0 %v242
  %v603 = vpop.f32.mrf.mxu0
  %v604 = vadd.f32 %v88, %v603
  %v605 = vpop.f32.mrf.mxu0
  %606 = vmatprep.mubr.f32.mxu0 0.0
  %607 = vmatmul.mubr.f32.gmra.mxu0 %v245
  %v608 = vpop.f32.mrf.mxu0
  %v609 = vadd.f32 %v88, %v608
  %v610 = vpop.f32.mrf.mxu0
  %611 = vmatprep.mubr.f32.mxu0 0.0
  %612 = vmatmul.mubr.f32.gmra.mxu0 %v248
  %v613 = vpop.f32.mrf.mxu0
  %v614 = vadd.f32 %v88, %v613
  %v615 = vpop.f32.mrf.mxu0
  %616 = vmatprep.mubr.f32.mxu0 0.0
  %617 = vmatmul.mubr.f32.gmra.mxu0 %v251
  %v618 = vpop.f32.mrf.mxu0
  %v619 = vadd.f32 %v88, %v618
  %v620 = vpop.f32.mrf.mxu0
  %621 = vmatprep.mubr.f32.mxu0 0.0
  %622 = vmatmul.mubr.f32.gmra.mxu0 %v254
  %v623 = vpop.f32.mrf.mxu0
  %v624 = vadd.f32 %v88, %v623
  %v625 = vpop.f32.mrf.mxu0
  %626 = vmatprep.mubr.f32.mxu0 0.0
  %627 = vmatmul.mubr.f32.gmra.mxu0 %v257
  %v628 = vpop.f32.mrf.mxu0
  %v629 = vadd.f32 %v88, %v628
  %v630 = vpop.f32.mrf.mxu0
  %631 = vmatprep.mubr.f32.mxu0 0.0
  %632 = vmatmul.mubr.f32.gmra.mxu0 %v260
  %v633 = vpop.f32.mrf.mxu0
  %v634 = vadd.f32 %v88, %v633
  %v635 = vpop.f32.mrf.mxu0
  %636 = vmatprep.mubr.f32.mxu0 0.0
  %637 = vmatmul.mubr.f32.gmra.mxu0 %v263
  %v638 = vpop.f32.mrf.mxu0
  %v639 = vadd.f32 %v88, %v638
  %v640 = vpop.f32.mrf.mxu0
  %641 = vmatprep.mubr.f32.mxu0 0.0
  %642 = vmatmul.mubr.f32.gmra.mxu0 %v266
  %v643 = vpop.f32.mrf.mxu0
  %v644 = vadd.f32 %v88, %v643
  %v645 = vpop.f32.mrf.mxu0
  %646 = vmatprep.mubr.f32.mxu0 0.0
  %647 = vmatmul.mubr.f32.gmra.mxu0 %v269
  %v648 = vpop.f32.mrf.mxu0
  %v649 = vadd.f32 %v88, %v648
  %v650 = vpop.f32.mrf.mxu0
  %651 = vmatprep.mubr.f32.mxu0 0.0
  %652 = vmatmul.mubr.f32.gmra.mxu0 %v272
  %v653 = vpop.f32.mrf.mxu0
  %v654 = vadd.f32 %v88, %v653
  %v655 = vpop.f32.mrf.mxu0
  %656 = vmatprep.mubr.f32.mxu0 0.0
  %657 = vmatmul.mubr.f32.gmra.mxu0 %v275
  %v658 = vpop.f32.mrf.mxu0
  %v659 = vadd.f32 %v88, %v658
  %v660 = vpop.f32.mrf.mxu0
  %661 = vmatprep.mubr.f32.mxu0 0.0
  %662 = vmatmul.mubr.f32.gmra.mxu0 %v278
  %v663 = vpop.f32.mrf.mxu0
  %v664 = vadd.f32 %v88, %v663
  %v665 = vpop.f32.mrf.mxu0
  %666 = vmatprep.mubr.f32.mxu0 0.0
  %667 = vmatmul.mubr.f32.gmra.mxu0 %v281
  %v668 = vpop.f32.mrf.mxu0
  %v669 = vadd.f32 %v88, %v668
  %v670 = vpop.f32.mrf.mxu0
  %671 = vdwg.mxu0
  %v672 = vmax.f32 %v354, 0.0
  %v673 = vmax.f32 %v359, 0.0
  %v674 = vmax.f32 %v364, 0.0
  %v675 = vmax.f32 %v369, 0.0
  %v676 = vmax.f32 %v374, 0.0
  %v677 = vmax.f32 %v379, 0.0
  %v678 = vmax.f32 %v384, 0.0
  %v679 = vmax.f32 %v389, 0.0
  %v680 = vmax.f32 %v394, 0.0
  %v681 = vmax.f32 %v399, 0.0
  %v682 = vmax.f32 %v404, 0.0
  %v683 = vmax.f32 %v409, 0.0
  %v684 = vmax.f32 %v414, 0.0
  %v685 = vmax.f32 %v419, 0.0
  %v686 = vmax.f32 %v424, 0.0
  %v687 = vmax.f32 %v429, 0.0
  %v688 = vmax.f32 %v434, 0.0
  %v689 = vmax.f32 %v439, 0.0
  %v690 = vmax.f32 %v444, 0.0
  %v691 = vmax.f32 %v449, 0.0
  %v692 = vmax.f32 %v454, 0.0
  %v693 = vmax.f32 %v459, 0.0
  %v694 = vmax.f32 %v464, 0.0
  %v695 = vmax.f32 %v469, 0.0
  %v696 = vmax.f32 %v474, 0.0
  %v697 = vmax.f32 %v479, 0.0
  %v698 = vmax.f32 %v484, 0.0
  %v699 = vmax.f32 %v489, 0.0
  %v700 = vmax.f32 %v494, 0.0
  %v701 = vmax.f32 %v499, 0.0
  %v702 = vmax.f32 %v504, 0.0
  %v703 = vmax.f32 %v509, 0.0
  %v704 = vmax.f32 %v514, 0.0
  %v705 = vmax.f32 %v519, 0.0
  %v706 = vmax.f32 %v524, 0.0
  %v707 = vmax.f32 %v529, 0.0
  %v708 = vmax.f32 %v534, 0.0
  %v709 = vmax.f32 %v539, 0.0
  %v710 = vmax.f32 %v544, 0.0
  %v711 = vmax.f32 %v549, 0.0
  %v712 = vmax.f32 %v554, 0.0
  %v713 = vmax.f32 %v559, 0.0
  %v714 = vmax.f32 %v564, 0.0
  %v715 = vmax.f32 %v569, 0.0
  %v716 = vmax.f32 %v574, 0.0
  %v717 = vmax.f32 %v579, 0.0
  %v718 = vmax.f32 %v584, 0.0
  %v719 = vmax.f32 %v589, 0.0
  %v720 = vmax.f32 %v594, 0.0
  %v721 = vmax.f32 %v599, 0.0
  %v722 = vmax.f32 %v604, 0.0
  %v723 = vmax.f32 %v609, 0.0
  %v724 = vmax.f32 %v614, 0.0
  %v725 = vmax.f32 %v619, 0.0
  %v726 = vmax.f32 %v624, 0.0
  %v727 = vmax.f32 %v629, 0.0
  %v728 = vmax.f32 %v634, 0.0
  %v729 = vmax.f32 %v639, 0.0
  %v730 = vmax.f32 %v644, 0.0
  %v731 = vmax.f32 %v649, 0.0
  %v732 = vmax.f32 %v654, 0.0
  %v733 = vmax.f32 %v659, 0.0
  %v734 = vmax.f32 %v664, 0.0
  %v735 = vmax.f32 %v669, 0.0
  %v736 = vadd.f32 %v672, %v673
  %v737 = vadd.f32 %v736, %v674
  %v738 = vadd.f32 %v737, %v675
  %v739 = vadd.f32 %v738, %v676
  %v740 = vadd.f32 %v739, %v677
  %v741 = vadd.f32 %v740, %v678
  %v742 = vadd.f32 %v741, %v679
  %v743 = vadd.f32 %v742, %v680
  %v744 = vadd.f32 %v743, %v681
  %v745 = vadd.f32 %v744, %v682
  %v746 = vadd.f32 %v745, %v683
  %v747 = vadd.f32 %v746, %v684
  %v748 = vadd.f32 %v747, %v685
  %v749 = vadd.f32 %v748, %v686
  %v750 = vadd.f32 %v749, %v687
  %v751 = vadd.f32 %v750, %v688
  %v752 = vadd.f32 %v751, %v689
  %v753 = vadd.f32 %v752, %v690
  %v754 = vadd.f32 %v753, %v691
  %v755 = vadd.f32 %v754, %v692
  %v756 = vadd.f32 %v755, %v693
  %v757 = vadd.f32 %v756, %v694
  %v758 = vadd.f32 %v757, %v695
  %v759 = vadd.f32 %v758, %v696
  %v760 = vadd.f32 %v759, %v697
  %v761 = vadd.f32 %v760, %v698
  %v762 = vadd.f32 %v761, %v699
  %v763 = vadd.f32 %v762, %v700
  %v764 = vadd.f32 %v763, %v701
  %v765 = vadd.f32 %v764, %v702
  %v766 = vadd.f32 %v765, %v703
  %v767 = vrot.slane %v766, 4
  %v768 = vadd.f32 %v766, %v767
  %v769 = vrot.slane %v768, 2
  %v770 = vadd.f32 %v768, %v769
  %v771 = vrot.slane %v770, 1
  %v772 = vadd.f32 %v770, %v771
  %v773 = vadd.f32 %v704, %v705
  %v774 = vadd.f32 %v773, %v706
  %v775 = vadd.f32 %v774, %v707
  %v776 = vadd.f32 %v775, %v708
  %v777 = vadd.f32 %v776, %v709
  %v778 = vadd.f32 %v777, %v710
  %v779 = vadd.f32 %v778, %v711
  %v780 = vadd.f32 %v779, %v712
  %v781 = vadd.f32 %v780, %v713
  %v782 = vadd.f32 %v781, %v714
  %v783 = vadd.f32 %v782, %v715
  %v784 = vadd.f32 %v783, %v716
  %v785 = vadd.f32 %v784, %v717
  %v786 = vadd.f32 %v785, %v718
  %v787 = vadd.f32 %v786, %v719
  %v788 = vadd.f32 %v787, %v720
  %v789 = vadd.f32 %v788, %v721
  %v790 = vadd.f32 %v789, %v722
  %v791 = vadd.f32 %v790, %v723
  %v792 = vadd.f32 %v791, %v724
  %v793 = vadd.f32 %v792, %v725
  %v794 = vadd.f32 %v793, %v726
  %v795 = vadd.f32 %v794, %v727
  %v796 = vadd.f32 %v795, %v728
  %v797 = vadd.f32 %v796, %v729
  %v798 = vadd.f32 %v797, %v730
  %v799 = vadd.f32 %v798, %v731
  %v800 = vadd.f32 %v799, %v732
  %v801 = vadd.f32 %v800, %v733
  %v802 = vadd.f32 %v801, %v734
  %v803 = vadd.f32 %v802, %v735
  %v804 = vrot.slane %v803, 4
  %v805 = vadd.f32 %v803, %v804
  %v806 = vrot.slane %v805, 2
  %v807 = vadd.f32 %v805, %v806
  %v808 = vrot.slane %v807, 1
  %v809 = vadd.f32 %v807, %v808
  %v810 = vmul.f32 %v772, 0.00390625
  %v811 = vmul.f32 %v809, 0.00390625
  %vm814 = vcmask 1041409
  %v815 = vsel %vm814, %v811, %v810
  %817 = vst [vmem:[%s3] sm:$0x3] %v815
  // Predicated region
  $region14: #{simclr_forward.2} parent=0 // pred_check
    _
  $region15: #{simclr_forward.2} parent=0 // pred_check_branch
    %819 = sbr.rel (0) target = $region17
  $region16: #{simclr_forward.2} parent=0 // pred_region
    _
  $region17: #{simclr_forward.2} parent=0 // pred_fallthru
    _
  // Predicated region
  $region18: #{simclr_forward.2} parent=0 // pred_check
    _
  $region19: #{simclr_forward.2} parent=0 // pred_check_branch
    %821 = sbr.rel (0) target = $region21
  $region20: #{simclr_forward.2} parent=0 // pred_region
    _
  $region21: #{simclr_forward.2} parent=0 // pred_fallthru
    _

// kernel: simclr_forward.3
$region0: #{simclr_forward.3}
  #allocation0 [shape = 'u32[]', space=smem, size = 0x4, offset = 0x4, fixed_abs, tag = 'smem constant byte address 0x4 - core index']
  #allocation1 [shape = 'u32[144,128]{1,0:T(1,128)}', space=vmem, size = 0x12000, scoped, tag = 'internal scratch']
  %s0 = inlined_call_operand.vmem [shape: f32[2,128], index: 0, kind: input, shape index: {}]
  %s1 = inlined_call_operand.vmem [shape: f32[128,512], index: 1, kind: input, shape index: {}]
  %s2 = inlined_call_operand.vmem [shape: f32[1,512], index: 2, kind: input, shape index: {}]
  %s3 = inlined_call_operand.vmem [shape: f32[1,512], index: 3, kind: input, shape index: {}]
  %s4 = inlined_call_operand.vmem [shape: f32[1,512], index: 4, kind: input, shape index: {}]
  %s5 = inlined_call_operand.vmem [shape: f32[512,128], index: 5, kind: input, shape index: {}]
  %s6 = inlined_call_operand.vmem [shape: f32[1,128], index: 6, kind: input, shape index: {}]
  %s7 = inlined_call_operand.vmem [shape: f32[1,128], index: 7, kind: input, shape index: {}]
  %s8 = inlined_call_operand.hbm [shape: f32[2,128], index: 8, kind: output, shape index: {}]
  %s9 = sld [smem:[#allocation0]]
  $region42: #{simclr_forward.3} parent=0
    _
  %s11 = ssub.s32 1, %s9
  %s12 = scalar_select 0, %s11, %s9
  $region1: #{simclr_forward.3} parent=0
    #allocation2 [shape = 'u8[1024]{0}', space=vmem, size = 0x400, scoped, tag = 'output window, operand 0, single buffered']
    #allocation3 [shape = 's32[1]{0}', space=sflag, size = 0x4, scoped, tag = 'scoped memory for simclr_forward.3']
    %13 = vsyncpa [#allocation3], 0
    // Predicated region
    $region2: #{simclr_forward.3} parent=1 // pred_check
      _
    $region3: #{simclr_forward.3} parent=1 // pred_check_branch
      %15 = sbr.rel (0) target = $region5
    $region4: #{simclr_forward.3} parent=1 // pred_region
      _
    $region5: #{simclr_forward.3} parent=1 // pred_fallthru
      _
    // Predicated region
    $region6: #{simclr_forward.3} parent=1 // pred_check
      _
    $region7: #{simclr_forward.3} parent=1 // pred_check_branch
      %17 = sbr.rel (0) target = $region9
    $region8: #{simclr_forward.3} parent=1 // pred_region
      _
    $region9: #{simclr_forward.3} parent=1 // pred_fallthru
      _
    // Predicated region
    $region10: #{simclr_forward.3} parent=1 // pred_check
      _
    $region11: #{simclr_forward.3} parent=1 // pred_check_branch
      %19 = sbr.rel (0) target = $region13
    $region12: #{simclr_forward.3} parent=1 // pred_region
      _
    $region13: #{simclr_forward.3} parent=1 // pred_fallthru
      _
    // Predicated region
    $region14: #{simclr_forward.3} parent=1 // pred_check
      _
    $region15: #{simclr_forward.3} parent=1 // pred_check_branch
      %21 = sbr.rel (0) target = $region17
    $region16: #{simclr_forward.3} parent=1 // pred_region
      _
    $region17: #{simclr_forward.3} parent=1 // pred_fallthru
      _
    // Predicated region
    $region18: #{simclr_forward.3} parent=1 // pred_check
      _
    $region19: #{simclr_forward.3} parent=1 // pred_check_branch
      %23 = sbr.rel (0) target = $region21
    $region20: #{simclr_forward.3} parent=1 // pred_region
      _
    $region21: #{simclr_forward.3} parent=1 // pred_fallthru
      _
    // Predicated region
    $region22: #{simclr_forward.3} parent=1 // pred_check
      _
    $region23: #{simclr_forward.3} parent=1 // pred_check_branch
      %25 = sbr.rel (0) target = $region25
    $region24: #{simclr_forward.3} parent=1 // pred_region
      _
    $region25: #{simclr_forward.3} parent=1 // pred_fallthru
      _
    // Predicated region
    $region26: #{simclr_forward.3} parent=1 // pred_check
      _
    $region27: #{simclr_forward.3} parent=1 // pred_check_branch
      %27 = sbr.rel (0) target = $region29
    $region28: #{simclr_forward.3} parent=1 // pred_region
      _
    $region29: #{simclr_forward.3} parent=1 // pred_fallthru
      _
    // Predicated region
    $region30: #{simclr_forward.3} parent=1 // pred_check
      _
    $region31: #{simclr_forward.3} parent=1 // pred_check_branch
      %29 = sbr.rel (0) target = $region33
    $region32: #{simclr_forward.3} parent=1 // pred_region
      _
    $region33: #{simclr_forward.3} parent=1 // pred_fallthru
      _
    %v30 = vld [vmem:[%s0] sm:$0x3]
    %v31 = vld [vmem:[%s1] sm:$0xff]
    %v32 = vld [vmem:[%s1 + $0x8] sm:$0xff]
    %v33 = vld [vmem:[%s1 + $0x10] sm:$0xff]
    %v34 = vld [vmem:[%s1 + $0x18] sm:$0xff]
    %v35 = vld [vmem:[%s1 + $0x20] sm:$0xff]
    %v36 = vld [vmem:[%s1 + $0x28] sm:$0xff]
    %v37 = vld [vmem:[%s1 + $0x30] sm:$0xff]
    %v38 = vld [vmem:[%s1 + $0x38] sm:$0xff]
    %v39 = vld [vmem:[%s1 + $0x40] sm:$0xff]
    %v40 = vld [vmem:[%s1 + $0x48] sm:$0xff]
    %v41 = vld [vmem:[%s1 + $0x50] sm:$0xff]
    %v42 = vld [vmem:[%s1 + $0x58] sm:$0xff]
    %v43 = vld [vmem:[%s1 + $0x60] sm:$0xff]
    %v44 = vld [vmem:[%s1 + $0x68] sm:$0xff]
    %v45 = vld [vmem:[%s1 + $0x70] sm:$0xff]
    %v46 = vld [vmem:[%s1 + $0x78] sm:$0xff]
    %v47 = vld [vmem:[%s1 + $0x80] sm:$0xff]
    %v48 = vld [vmem:[%s1 + $0x88] sm:$0xff]
    %v49 = vld [vmem:[%s1 + $0x90] sm:$0xff]
    %v50 = vld [vmem:[%s1 + $0x98] sm:$0xff]
    %v51 = vld [vmem:[%s1 + $0xa0] sm:$0xff]
    %v52 = vld [vmem:[%s1 + $0xa8] sm:$0xff]
    %v53 = vld [vmem:[%s1 + $0xb0] sm:$0xff]
    %v54 = vld [vmem:[%s1 + $0xb8] sm:$0xff]
    %v55 = vld [vmem:[%s1 + $0xc0] sm:$0xff]
    %v56 = vld [vmem:[%s1 + $0xc8] sm:$0xff]
    %v57 = vld [vmem:[%s1 + $0xd0] sm:$0xff]
    %v58 = vld [vmem:[%s1 + $0xd8] sm:$0xff]
    %v59 = vld [vmem:[%s1 + $0xe0] sm:$0xff]
    %v60 = vld [vmem:[%s1 + $0xe8] sm:$0xff]
    %v61 = vld [vmem:[%s1 + $0xf0] sm:$0xff]
    %v62 = vld [vmem:[%s1 + $0xf8] sm:$0xff]
    %v63 = vld [vmem:[%s1 + $0x100] sm:$0xff]
    %v64 = vld [vmem:[%s1 + $0x108] sm:$0xff]
    %v65 = vld [vmem:[%s1 + $0x110] sm:$0xff]
    %v66 = vld [vmem:[%s1 + $0x118] sm:$0xff]
    %v67 = vld [vmem:[%s1 + $0x120] sm:$0xff]
    %v68 = vld [vmem:[%s1 + $0x128] sm:$0xff]
    %v69 = vld [vmem:[%s1 + $0x130] sm:$0xff]
    %v70 = vld [vmem:[%s1 + $0x138] sm:$0xff]
    %v71 = vld [vmem:[%s1 + $0x140] sm:$0xff]
    %v72 = vld [vmem:[%s1 + $0x148] sm:$0xff]
    %v73 = vld [vmem:[%s1 + $0x150] sm:$0xff]
    %v74 = vld [vmem:[%s1 + $0x158] sm:$0xff]
    %v75 = vld [vmem:[%s1 + $0x160] sm:$0xff]
    %v76 = vld [vmem:[%s1 + $0x168] sm:$0xff]
    %v77 = vld [vmem:[%s1 + $0x170] sm:$0xff]
    %v78 = vld [vmem:[%s1 + $0x178] sm:$0xff]
    %v79 = vld [vmem:[%s1 + $0x180] sm:$0xff]
    %v80 = vld [vmem:[%s1 + $0x188] sm:$0xff]
    %v81 = vld [vmem:[%s1 + $0x190] sm:$0xff]
    %v82 = vld [vmem:[%s1 + $0x198] sm:$0xff]
    %v83 = vld [vmem:[%s1 + $0x1a0] sm:$0xff]
    %v84 = vld [vmem:[%s1 + $0x1a8] sm:$0xff]
    %v85 = vld [vmem:[%s1 + $0x1b0] sm:$0xff]
    %v86 = vld [vmem:[%s1 + $0x1b8] sm:$0xff]
    %v87 = vld [vmem:[%s1 + $0x1c0] sm:$0xff]
    %v88 = vld [vmem:[%s1 + $0x1c8] sm:$0xff]
    %v89 = vld [vmem:[%s1 + $0x1d0] sm:$0xff]
    %v90 = vld [vmem:[%s1 + $0x1d8] sm:$0xff]
    %v91 = vld [vmem:[%s1 + $0x1e0] sm:$0xff]
    %v92 = vld [vmem:[%s1 + $0x1e8] sm:$0xff]
    %v93 = vld [vmem:[%s1 + $0x1f0] sm:$0xff]
    %v94 = vld [vmem:[%s1 + $0x1f8] sm:$0xff]
    %v95 = vld [vmem:[%s2] sm:$0xf]
    %v97 = vlaneseq
    %v98 = vshrl.u32 %v97, 7
    %v99 = vsub.s32 0, %v98
    %v100 = vrot.slane %v95, %v99
    %v101 = vlaneseq
    %v102 = vshrl.u32 %v101, 7
    %v103 = vsub.s32 1, %v102
    %v104 = vrot.slane %v95, %v103
    %v105 = vlaneseq
    %v106 = vshrl.u32 %v105, 7
    %v107 = vsub.s32 2, %v106
    %v108 = vrot.slane %v95, %v107
    %v109 = vlaneseq
    %v110 = vshrl.u32 %v109, 7
    %v111 = vsub.s32 3, %v110
    %v112 = vrot.slane %v95, %v111
    %117 = vmatprep.subr.mxu0 %v92
    %118 = vmatpush1.msra.mxu0 %v91
    %119 = vmatprep.subr.mxu0 %v88
    %120 = vmatpush1.msra.mxu0 %v87
    %121 = vmatprep.subr.mxu0 %v84
    %122 = vmatpush1.msra.mxu0 %v83
    %123 = vmatprep.subr.mxu0 %v80
    %124 = vmatpush1.msra.mxu0 %v79
    %125 = vmatprep.subr.mxu0 %v76
    %126 = vmatpush1.msra.mxu0 %v75
    %127 = vmatprep.subr.mxu0 %v72
    %128 = vmatpush1.msra.mxu0 %v71
    %129 = vmatprep.subr.mxu0 %v68
    %130 = vmatpush1.msra.mxu0 %v67
    %131 = vmatprep.subr.mxu0 %v64
    %132 = vmatpush1.msra.mxu0 %v63
    %133 = vmatprep.subr.mxu0 %v60
    %134 = vmatpush1.msra.mxu0 %v59
    %135 = vmatprep.subr.mxu0 %v56
    %136 = vmatpush1.msra.mxu0 %v55
    %137 = vmatprep.subr.mxu0 %v52
    %138 = vmatpush1.msra.mxu0 %v51
    %139 = vmatprep.subr.mxu0 %v48
    %140 = vmatpush1.msra.mxu0 %v47
    %141 = vmatprep.subr.mxu0 %v44
    %142 = vmatpush1.msra.mxu0 %v43
    %143 = vmatprep.subr.mxu0 %v40
    %144 = vmatpush1.msra.mxu0 %v39
    %145 = vmatprep.subr.mxu0 %v36
    %146 = vmatpush1.msra.mxu0 %v35
    %147 = vmatprep.subr.mxu0 %v32
    %148 = vmatpush1.msra.mxu0 %v31
    %149 = vmatprep.subr.mxu0 0.0
    %150 = vmatpush2.msra.mxu0 0.0
    %151 = vmatprep.subr.mxu0 0.0
    %152 = vmatpush2.msra.mxu0 0.0
    %153 = vmatprep.subr.mxu0 0.0
    %154 = vmatpush2.msra.mxu0 0.0
    %155 = vmatprep.subr.mxu0 0.0
    %156 = vmatpush2.msra.mxu0 0.0
    %157 = vmatprep.subr.mxu0 0.0
    %158 = vmatpush2.msra.mxu0 0.0
    %159 = vmatprep.subr.mxu0 0.0
    %160 = vmatpush2.msra.mxu0 0.0
    %161 = vmatprep.subr.mxu0 0.0
    %162 = vmatpush2.msra.mxu0 0.0
    %163 = vmatprep.subr.mxu0 0.0
    %164 = vmatpush2.msra.mxu0 0.0
    %165 = vmatprep.subr.mxu0 0.0
    %166 = vmatpush2.msra.mxu0 0.0
    %167 = vmatprep.subr.mxu0 0.0
    %168 = vmatpush2.msra.mxu0 0.0
    %169 = vmatprep.subr.mxu0 0.0
    %170 = vmatpush2.msra.mxu0 0.0
    %171 = vmatprep.subr.mxu0 0.0
    %172 = vmatpush2.msra.mxu0 0.0
    %173 = vmatprep.subr.mxu0 0.0
    %174 = vmatpush2.msra.mxu0 0.0
    %175 = vmatprep.subr.mxu0 0.0
    %176 = vmatpush2.msra.mxu0 0.0
    %177 = vmatprep.subr.mxu0 0.0
    %178 = vmatpush2.msra.mxu0 0.0
    %179 = vmatprep.subr.mxu0 0.0
    %180 = vmatpush2.msra.mxu0 0.0
    %181 = vmatprep.mubr.f32.mxu0 0.0
    %182 = vmatmul.mubr.f32.gmra.mxu0 %v30
    %v183 = vpop.f32.mrf.mxu0
    %v184 = vadd.f32 %v100, %v183
    %v185 = vpop.f32.mrf.mxu0
    %v186 = vadd.f32 %v104, %v185
    %187 = vdwg.mxu0
    %188 = vmatprep.subr.mxu0 %v94
    %189 = vmatpush1.msra.mxu0 %v93
    %190 = vmatprep.subr.mxu0 %v90
    %191 = vmatpush1.msra.mxu0 %v89
    %192 = vmatprep.subr.mxu0 %v86
    %193 = vmatpush1.msra.mxu0 %v85
    %194 = vmatprep.subr.mxu0 %v82
    %195 = vmatpush1.msra.mxu0 %v81
    %196 = vmatprep.subr.mxu0 %v78
    %197 = vmatpush1.msra.mxu0 %v77
    %198 = vmatprep.subr.mxu0 %v74
    %199 = vmatpush1.msra.mxu0 %v73
    %200 = vmatprep.subr.mxu0 %v70
    %201 = vmatpush1.msra.mxu0 %v69
    %202 = vmatprep.subr.mxu0 %v66
    %203 = vmatpush1.msra.mxu0 %v65
    %204 = vmatprep.subr.mxu0 %v62
    %205 = vmatpush1.msra.mxu0 %v61
    %206 = vmatprep.subr.mxu0 %v58
    %207 = vmatpush1.msra.mxu0 %v57
    %208 = vmatprep.subr.mxu0 %v54
    %209 = vmatpush1.msra.mxu0 %v53
    %210 = vmatprep.subr.mxu0 %v50
    %211 = vmatpush1.msra.mxu0 %v49
    %212 = vmatprep.subr.mxu0 %v46
    %213 = vmatpush1.msra.mxu0 %v45
    %214 = vmatprep.subr.mxu0 %v42
    %215 = vmatpush1.msra.mxu0 %v41
    %216 = vmatprep.subr.mxu0 %v38
    %217 = vmatpush1.msra.mxu0 %v37
    %218 = vmatprep.subr.mxu0 %v34
    %219 = vmatpush1.msra.mxu0 %v33
    %220 = vmatprep.subr.mxu0 0.0
    %221 = vmatpush2.msra.mxu0 0.0
    %222 = vmatprep.subr.mxu0 0.0
    %223 = vmatpush2.msra.mxu0 0.0
    %224 = vmatprep.subr.mxu0 0.0
    %225 = vmatpush2.msra.mxu0 0.0
    %226 = vmatprep.subr.mxu0 0.0
    %227 = vmatpush2.msra.mxu0 0.0
    %228 = vmatprep.subr.mxu0 0.0
    %229 = vmatpush2.msra.mxu0 0.0
    %230 = vmatprep.subr.mxu0 0.0
    %231 = vmatpush2.msra.mxu0 0.0
    %232 = vmatprep.subr.mxu0 0.0
    %233 = vmatpush2.msra.mxu0 0.0
    %234 = vmatprep.subr.mxu0 0.0
    %235 = vmatpush2.msra.mxu0 0.0
    %236 = vmatprep.subr.mxu0 0.0
    %237 = vmatpush2.msra.mxu0 0.0
    %238 = vmatprep.subr.mxu0 0.0
    %239 = vmatpush2.msra.mxu0 0.0
    %240 = vmatprep.subr.mxu0 0.0
    %241 = vmatpush2.msra.mxu0 0.0
    %242 = vmatprep.subr.mxu0 0.0
    %243 = vmatpush2.msra.mxu0 0.0
    %244 = vmatprep.subr.mxu0 0.0
    %245 = vmatpush2.msra.mxu0 0.0
    %246 = vmatprep.subr.mxu0 0.0
    %247 = vmatpush2.msra.mxu0 0.0
    %248 = vmatprep.subr.mxu0 0.0
    %249 = vmatpush2.msra.mxu0 0.0
    %250 = vmatprep.subr.mxu0 0.0
    %251 = vmatpush2.msra.mxu0 0.0
    %252 = vmatprep.mubr.f32.mxu0 0.0
    %253 = vmatmul.mubr.f32.gmra.mxu0 %v30
    %v254 = vpop.f32.mrf.mxu0
    %v255 = vadd.f32 %v108, %v254
    %v256 = vpop.f32.mrf.mxu0
    %v257 = vadd.f32 %v112, %v256
    %258 = vdwg.mxu0
    %vm259 = vcmask 1041408
    %v260 = vsel %vm259, %v184, 0.0
    %v261 = vrot.slane %v260, 4
    %v262 = vadd.f32 %v260, %v261
    %v263 = vrot.slane %v262, 2
    %v264 = vadd.f32 %v262, %v263
    %v265 = vrot.slane %v264, 1
    %v266 = vadd.f32 %v264, %v265
    %v267 = vsel %vm259, %v186, 0.0
    %v268 = vrot.slane %v267, 4
    %v269 = vadd.f32 %v267, %v268
    %v270 = vrot.slane %v269, 2
    %v271 = vadd.f32 %v269, %v270
    %v272 = vrot.slane %v271, 1
    %v273 = vadd.f32 %v271, %v272
    %v274 = vsel %vm259, %v255, 0.0
    %v275 = vrot.slane %v274, 4
    %v276 = vadd.f32 %v274, %v275
    %v277 = vrot.slane %v276, 2
    %v278 = vadd.f32 %v276, %v277
    %v279 = vrot.slane %v278, 1
    %v280 = vadd.f32 %v278, %v279
    %v281 = vsel %vm259, %v257, 0.0
    %v282 = vrot.slane %v281, 4
    %v283 = vadd.f32 %v281, %v282
    %v284 = vrot.slane %v283, 2
    %v285 = vadd.f32 %v283, %v284
    %v286 = vrot.slane %v285, 1
    %v287 = vadd.f32 %v285, %v286
    %v288 = vrcp.pop 2.0
    %v289 = vmul.f32 %v266, %v288
    %v290 = vmul.f32 %v273, %v288
    %v291 = vmul.f32 %v280, %v288
    %v292 = vmul.f32 %v287, %v288
    %v293 = vsub.f32 %v184, %v289
    %v294 = vsub.f32 %v186, %v290
    %v295 = vsub.f32 %v255, %v291
    %v296 = vsub.f32 %v257, %v292
    %v297 = vmul.f32 %v293, %v293
    %v298 = vmul.f32 %v294, %v294
    %v299 = vmul.f32 %v295, %v295
    %v300 = vmul.f32 %v296, %v296
    %v301 = vsel %vm259, %v297, 0.0
    %v302 = vrot.slane %v301, 4
    %v303 = vadd.f32 %v301, %v302
    %v304 = vrot.slane %v303, 2
    %v305 = vadd.f32 %v303, %v304
    %v306 = vrot.slane %v305, 1
    %v307 = vadd.f32 %v305, %v306
    %v308 = vsel %vm259, %v298, 0.0
    %v309 = vrot.slane %v308, 4
    %v310 = vadd.f32 %v308, %v309
    %v311 = vrot.slane %v310, 2
    %v312 = vadd.f32 %v310, %v311
    %v313 = vrot.slane %v312, 1
    %v314 = vadd.f32 %v312, %v313
    %v315 = vsel %vm259, %v299, 0.0
    %v316 = vrot.slane %v315, 4
    %v317 = vadd.f32 %v315, %v316
    %v318 = vrot.slane %v317, 2
    %v319 = vadd.f32 %v317, %v318
    %v320 = vrot.slane %v319, 1
    %v321 = vadd.f32 %v319, %v320
    %v322 = vsel %vm259, %v300, 0.0
    %v323 = vrot.slane %v322, 4
    %v324 = vadd.f32 %v322, %v323
    %v325 = vrot.slane %v324, 2
    %v326 = vadd.f32 %v324, %v325
    %v327 = vrot.slane %v326, 1
    %v328 = vadd.f32 %v326, %v327
    %v329 = vmul.f32 %v307, %v288
    %v330 = vmul.f32 %v314, %v288
    %v331 = vmul.f32 %v321, %v288
    %v332 = vmul.f32 %v328, %v288
    %v333 = vadd.f32 %v329, 1e-05
    %v334 = vadd.f32 %v330, 1e-05
    %v335 = vadd.f32 %v331, 1e-05
    %v336 = vadd.f32 %v332, 1e-05
    %v337 = vrsqrt.pop %v333
    %v338 = vrsqrt.pop %v334
    %v339 = vrsqrt.pop %v335
    %v340 = vrsqrt.pop %v336
    %v341 = vmul.f32 %v293, %v337
    %v342 = vmul.f32 %v294, %v338
    %v343 = vmul.f32 %v295, %v339
    %v344 = vmul.f32 %v296, %v340
    %v345 = vld [vmem:[%s3] sm:$0xf]
    %v347 = vlaneseq
    %v348 = vshrl.u32 %v347, 7
    %v349 = vsub.s32 0, %v348
    %v350 = vrot.slane %v345, %v349
    %v351 = vlaneseq
    %v352 = vshrl.u32 %v351, 7
    %v353 = vsub.s32 1, %v352
    %v354 = vrot.slane %v345, %v353
    %v355 = vlaneseq
    %v356 = vshrl.u32 %v355, 7
    %v357 = vsub.s32 2, %v356
    %v358 = vrot.slane %v345, %v357
    %v359 = vlaneseq
    %v360 = vshrl.u32 %v359, 7
    %v361 = vsub.s32 3, %v360
    %v362 = vrot.slane %v345, %v361
    %v367 = vmul.f32 %v341, %v350
    %v368 = vmul.f32 %v342, %v354
    %v369 = vmul.f32 %v343, %v358
    %v370 = vmul.f32 %v344, %v362
    %v371 = vld [vmem:[%s4] sm:$0xf]
    %v373 = vlaneseq
    %v374 = vshrl.u32 %v373, 7
    %v375 = vsub.s32 0, %v374
    %v376 = vrot.slane %v371, %v375
    %v377 = vlaneseq
    %v378 = vshrl.u32 %v377, 7
    %v379 = vsub.s32 1, %v378
    %v380 = vrot.slane %v371, %v379
    %v381 = vlaneseq
    %v382 = vshrl.u32 %v381, 7
    %v383 = vsub.s32 2, %v382
    %v384 = vrot.slane %v371, %v383
    %v385 = vlaneseq
    %v386 = vshrl.u32 %v385, 7
    %v387 = vsub.s32 3, %v386
    %v388 = vrot.slane %v371, %v387
    %v393 = vadd.f32 %v367, %v376
    %v394 = vadd.f32 %v368, %v380
    %v395 = vadd.f32 %v369, %v384
    %v396 = vadd.f32 %v370, %v388
    %v397 = vmax.f32 %v393, 0.0
    %v398 = vmax.f32 %v394, 0.0
    %v399 = vmax.f32 %v395, 0.0
    %v400 = vmax.f32 %v396, 0.0
    %v401 = vld [vmem:[%s5] sm:$0xff]
    %v402 = vld [vmem:[%s5 + $0x8] sm:$0xff]
    %v403 = vld [vmem:[%s5 + $0x10] sm:$0xff]
    %v404 = vld [vmem:[%s5 + $0x18] sm:$0xff]
    %v405 = vld [vmem:[%s5 + $0x20] sm:$0xff]
    %v406 = vld [vmem:[%s5 + $0x28] sm:$0xff]
    %v407 = vld [vmem:[%s5 + $0x30] sm:$0xff]
    %v408 = vld [vmem:[%s5 + $0x38] sm:$0xff]
    %v409 = vld [vmem:[%s5 + $0x40] sm:$0xff]
    %v410 = vld [vmem:[%s5 + $0x48] sm:$0xff]
    %v411 = vld [vmem:[%s5 + $0x50] sm:$0xff]
    %v412 = vld [vmem:[%s5 + $0x58] sm:$0xff]
    %v413 = vld [vmem:[%s5 + $0x60] sm:$0xff]
    %v414 = vld [vmem:[%s5 + $0x68] sm:$0xff]
    %v415 = vld [vmem:[%s5 + $0x70] sm:$0xff]
    %v416 = vld [vmem:[%s5 + $0x78] sm:$0xff]
    %v417 = vld [vmem:[%s5 + $0x80] sm:$0xff]
    %v418 = vld [vmem:[%s5 + $0x88] sm:$0xff]
    %v419 = vld [vmem:[%s5 + $0x90] sm:$0xff]
    %v420 = vld [vmem:[%s5 + $0x98] sm:$0xff]
    %v421 = vld [vmem:[%s5 + $0xa0] sm:$0xff]
    %v422 = vld [vmem:[%s5 + $0xa8] sm:$0xff]
    %v423 = vld [vmem:[%s5 + $0xb0] sm:$0xff]
    %v424 = vld [vmem:[%s5 + $0xb8] sm:$0xff]
    %v425 = vld [vmem:[%s5 + $0xc0] sm:$0xff]
    %v426 = vld [vmem:[%s5 + $0xc8] sm:$0xff]
    %v427 = vld [vmem:[%s5 + $0xd0] sm:$0xff]
    %v428 = vld [vmem:[%s5 + $0xd8] sm:$0xff]
    %v429 = vld [vmem:[%s5 + $0xe0] sm:$0xff]
    %v430 = vld [vmem:[%s5 + $0xe8] sm:$0xff]
    %v431 = vld [vmem:[%s5 + $0xf0] sm:$0xff]
    %v432 = vld [vmem:[%s5 + $0xf8] sm:$0xff]
    %v433 = vld [vmem:[%s5 + $0x100] sm:$0xff]
    %v434 = vld [vmem:[%s5 + $0x108] sm:$0xff]
    %v435 = vld [vmem:[%s5 + $0x110] sm:$0xff]
    %v436 = vld [vmem:[%s5 + $0x118] sm:$0xff]
    %v437 = vld [vmem:[%s5 + $0x120] sm:$0xff]
    %v438 = vld [vmem:[%s5 + $0x128] sm:$0xff]
    %v439 = vld [vmem:[%s5 + $0x130] sm:$0xff]
    %v440 = vld [vmem:[%s5 + $0x138] sm:$0xff]
    %v441 = vld [vmem:[%s5 + $0x140] sm:$0xff]
    %v442 = vld [vmem:[%s5 + $0x148] sm:$0xff]
    %v443 = vld [vmem:[%s5 + $0x150] sm:$0xff]
    %v444 = vld [vmem:[%s5 + $0x158] sm:$0xff]
    %v445 = vld [vmem:[%s5 + $0x160] sm:$0xff]
    %v446 = vld [vmem:[%s5 + $0x168] sm:$0xff]
    %v447 = vld [vmem:[%s5 + $0x170] sm:$0xff]
    %v448 = vld [vmem:[%s5 + $0x178] sm:$0xff]
    %v449 = vld [vmem:[%s5 + $0x180] sm:$0xff]
    %v450 = vld [vmem:[%s5 + $0x188] sm:$0xff]
    %v451 = vld [vmem:[%s5 + $0x190] sm:$0xff]
    %v452 = vld [vmem:[%s5 + $0x198] sm:$0xff]
    %v453 = vld [vmem:[%s5 + $0x1a0] sm:$0xff]
    %v454 = vld [vmem:[%s5 + $0x1a8] sm:$0xff]
    %v455 = vld [vmem:[%s5 + $0x1b0] sm:$0xff]
    %v456 = vld [vmem:[%s5 + $0x1b8] sm:$0xff]
    %v457 = vld [vmem:[%s5 + $0x1c0] sm:$0xff]
    %v458 = vld [vmem:[%s5 + $0x1c8] sm:$0xff]
    %v459 = vld [vmem:[%s5 + $0x1d0] sm:$0xff]
    %v460 = vld [vmem:[%s5 + $0x1d8] sm:$0xff]
    %v461 = vld [vmem:[%s5 + $0x1e0] sm:$0xff]
    %v462 = vld [vmem:[%s5 + $0x1e8] sm:$0xff]
    %v463 = vld [vmem:[%s5 + $0x1f0] sm:$0xff]
    %v464 = vld [vmem:[%s5 + $0x1f8] sm:$0xff]
    %v465 = vld [vmem:[%s6] sm:$0x1]
    %v467 = vlaneseq
    %v468 = vshrl.u32 %v467, 7
    %v469 = vsub.s32 0, %v468
    %v470 = vrot.slane %v465, %v469
    %472 = vmatprep.subr.mxu0 0.0
    %473 = vmatpush1.msra.mxu0 %v416
    %474 = vmatprep.subr.mxu0 0.0
    %475 = vmatpush1.msra.mxu0 %v415
    %476 = vmatprep.subr.mxu0 0.0
    %477 = vmatpush1.msra.mxu0 %v414
    %478 = vmatprep.subr.mxu0 0.0
    %479 = vmatpush1.msra.mxu0 %v413
    %480 = vmatprep.subr.mxu0 0.0
    %481 = vmatpush1.msra.mxu0 %v412
    %482 = vmatprep.subr.mxu0 0.0
    %483 = vmatpush1.msra.mxu0 %v411
    %484 = vmatprep.subr.mxu0 0.0
    %485 = vmatpush1.msra.mxu0 %v410
    %486 = vmatprep.subr.mxu0 0.0
    %487 = vmatpush1.msra.mxu0 %v409
    %488 = vmatprep.subr.mxu0 0.0
    %489 = vmatpush1.msra.mxu0 %v408
    %490 = vmatprep.subr.mxu0 0.0
    %491 = vmatpush1.msra.mxu0 %v407
    %492 = vmatprep.subr.mxu0 0.0
    %493 = vmatpush1.msra.mxu0 %v406
    %494 = vmatprep.subr.mxu0 0.0
    %495 = vmatpush1.msra.mxu0 %v405
    %496 = vmatprep.subr.mxu0 0.0
    %497 = vmatpush1.msra.mxu0 %v404
    %498 = vmatprep.subr.mxu0 0.0
    %499 = vmatpush1.msra.mxu0 %v403
    %500 = vmatprep.subr.mxu0 0.0
    %501 = vmatpush1.msra.mxu0 %v402
    %502 = vmatprep.subr.mxu0 0.0
    %503 = vmatpush1.msra.mxu0 %v401
    %504 = vmatprep.subr.mxu0 0.0
    %505 = vmatpush2.msra.mxu0 %v432
    %506 = vmatprep.subr.mxu0 0.0
    %507 = vmatpush2.msra.mxu0 %v431
    %508 = vmatprep.subr.mxu0 0.0
    %509 = vmatpush2.msra.mxu0 %v430
    %510 = vmatprep.subr.mxu0 0.0
    %511 = vmatpush2.msra.mxu0 %v429
    %512 = vmatprep.subr.mxu0 0.0
    %513 = vmatpush2.msra.mxu0 %v428
    %514 = vmatprep.subr.mxu0 0.0
    %515 = vmatpush2.msra.mxu0 %v427
    %516 = vmatprep.subr.mxu0 0.0
    %517 = vmatpush2.msra.mxu0 %v426
    %518 = vmatprep.subr.mxu0 0.0
    %519 = vmatpush2.msra.mxu0 %v425
    %520 = vmatprep.subr.mxu0 0.0
    %521 = vmatpush2.msra.mxu0 %v424
    %522 = vmatprep.subr.mxu0 0.0
    %523 = vmatpush2.msra.mxu0 %v423
    %524 = vmatprep.subr.mxu0 0.0
    %525 = vmatpush2.msra.mxu0 %v422
    %526 = vmatprep.subr.mxu0 0.0
    %527 = vmatpush2.msra.mxu0 %v421
    %528 = vmatprep.subr.mxu0 0.0
    %529 = vmatpush2.msra.mxu0 %v420
    %530 = vmatprep.subr.mxu0 0.0
    %531 = vmatpush2.msra.mxu0 %v419
    %532 = vmatprep.subr.mxu0 0.0
    %533 = vmatpush2.msra.mxu0 %v418
    %534 = vmatprep.subr.mxu0 0.0
    %535 = vmatpush2.msra.mxu0 %v417
    %536 = vmatprep.mubr.f32.mxu0 %v398
    %537 = vmatmul.mubr.f32.gmra.mxu0 %v397
    %v538 = vpop.f32.mrf.mxu0
    %v539 = vadd.f32 %v470, %v538
    %v540 = vpop.f32.mrf.mxu0
    %541 = vdwg.mxu0
    %542 = vmatprep.subr.mxu0 0.0
    %543 = vmatpush1.msra.mxu0 %v448
    %544 = vmatprep.subr.mxu0 0.0
    %545 = vmatpush1.msra.mxu0 %v447
    %546 = vmatprep.subr.mxu0 0.0
    %547 = vmatpush1.msra.mxu0 %v446
    %548 = vmatprep.subr.mxu0 0.0
    %549 = vmatpush1.msra.mxu0 %v445
    %550 = vmatprep.subr.mxu0 0.0
    %551 = vmatpush1.msra.mxu0 %v444
    %552 = vmatprep.subr.mxu0 0.0
    %553 = vmatpush1.msra.mxu0 %v443
    %554 = vmatprep.subr.mxu0 0.0
    %555 = vmatpush1.msra.mxu0 %v442
    %556 = vmatprep.subr.mxu0 0.0
    %557 = vmatpush1.msra.mxu0 %v441
    %558 = vmatprep.subr.mxu0 0.0
    %559 = vmatpush1.msra.mxu0 %v440
    %560 = vmatprep.subr.mxu0 0.0
    %561 = vmatpush1.msra.mxu0 %v439
    %562 = vmatprep.subr.mxu0 0.0
    %563 = vmatpush1.msra.mxu0 %v438
    %564 = vmatprep.subr.mxu0 0.0
    %565 = vmatpush1.msra.mxu0 %v437
    %566 = vmatprep.subr.mxu0 0.0
    %567 = vmatpush1.msra.mxu0 %v436
    %568 = vmatprep.subr.mxu0 0.0
    %569 = vmatpush1.msra.mxu0 %v435
    %570 = vmatprep.subr.mxu0 0.0
    %571 = vmatpush1.msra.mxu0 %v434
    %572 = vmatprep.subr.mxu0 0.0
    %573 = vmatpush1.msra.mxu0 %v433
    %574 = vmatprep.subr.mxu0 0.0
    %575 = vmatpush2.msra.mxu0 %v464
    %576 = vmatprep.subr.mxu0 0.0
    %577 = vmatpush2.msra.mxu0 %v463
    %578 = vmatprep.subr.mxu0 0.0
    %579 = vmatpush2.msra.mxu0 %v462
    %580 = vmatprep.subr.mxu0 0.0
    %581 = vmatpush2.msra.mxu0 %v461
    %582 = vmatprep.subr.mxu0 0.0
    %583 = vmatpush2.msra.mxu0 %v460
    %584 = vmatprep.subr.mxu0 0.0
    %585 = vmatpush2.msra.mxu0 %v459
    %586 = vmatprep.subr.mxu0 0.0
    %587 = vmatpush2.msra.mxu0 %v458
    %588 = vmatprep.subr.mxu0 0.0
    %589 = vmatpush2.msra.mxu0 %v457
    %590 = vmatprep.subr.mxu0 0.0
    %591 = vmatpush2.msra.mxu0 %v456
    %592 = vmatprep.subr.mxu0 0.0
    %593 = vmatpush2.msra.mxu0 %v455
    %594 = vmatprep.subr.mxu0 0.0
    %595 = vmatpush2.msra.mxu0 %v454
    %596 = vmatprep.subr.mxu0 0.0
    %597 = vmatpush2.msra.mxu0 %v453
    %598 = vmatprep.subr.mxu0 0.0
    %599 = vmatpush2.msra.mxu0 %v452
    %600 = vmatprep.subr.mxu0 0.0
    %601 = vmatpush2.msra.mxu0 %v451
    %602 = vmatprep.subr.mxu0 0.0
    %603 = vmatpush2.msra.mxu0 %v450
    %604 = vmatprep.subr.mxu0 0.0
    %605 = vmatpush2.msra.mxu0 %v449
    %606 = vmatprep.mubr.f32.mxu0 %v400
    %607 = vmatmul.mubr.f32.gmra.mxu0 %v399
    %v608 = vpop.f32.mrf.mxu0
    %v609 = vadd.f32 %v539, %v608
    %v610 = vpop.f32.mrf.mxu0
    %611 = vdwg.mxu0
    %v612 = vsel %vm259, %v609, 0.0
    %v613 = vrot.slane %v612, 4
    %v614 = vadd.f32 %v612, %v613
    %v615 = vrot.slane %v614, 2
    %v616 = vadd.f32 %v614, %v615
    %v617 = vrot.slane %v616, 1
    %v618 = vadd.f32 %v616, %v617
    %v619 = vmul.f32 %v618, %v288
    %v620 = vsub.f32 %v609, %v619
    %v621 = vmul.f32 %v620, %v620
    %v622 = vsel %vm259, %v621, 0.0
    %v623 = vrot.slane %v622, 4
    %v624 = vadd.f32 %v622, %v623
    %v625 = vrot.slane %v624, 2
    %v626 = vadd.f32 %v624, %v625
    %v627 = vrot.slane %v626, 1
    %v628 = vadd.f32 %v626, %v627
    %v629 = vmul.f32 %v628, %v288
    %v630 = vadd.f32 %v629, 1e-05
    %v631 = vrsqrt.pop %v630
    %v632 = vmul.f32 %v620, %v631
    %v633 = vld [vmem:[%s7] sm:$0x1]
    %v635 = vlaneseq
    %v636 = vshrl.u32 %v635, 7
    %v637 = vsub.s32 0, %v636
    %v638 = vrot.slane %v633, %v637
    %v640 = vmul.f32 %v632, %v638
    %641 = vst [vmem:[#allocation2] sm:$0x3] %v640
    // Predicated region
    $region34: #{simclr_forward.3} parent=1 // pred_check
      _
    $region35: #{simclr_forward.3} parent=1 // pred_check_branch
      %643 = sbr.rel (0) target = $region37
    $region36: #{simclr_forward.3} parent=1 // pred_region
      %s645 = ssub.s32 32, 32
      %646 = vsyncadd [#allocation3], %s645
      %s648 = sshll.u32 [#allocation2], 4
      %s649 = int_to_ptr.vmem [resolvable:$true] %s648
      %651 = dma.vmem_to_hbm [thread:$0]  %s649, 32, %s8, [#allocation3]
    $region37: #{simclr_forward.3} parent=1 // pred_fallthru
      _
    // Predicated region
    $region38: #{simclr_forward.3} parent=1 // pred_check
      _
    $region39: #{simclr_forward.3} parent=1 // pred_check_branch
      %653 = sbr.rel (0) target = $region41
    $region40: #{simclr_forward.3} parent=1 // pred_region
      %654 = dma.done [#allocation3], 32
    $region41: #{simclr_forward.3} parent=1 // pred_fallthru
      _
    %655 = vsyncpa [#allocation3], 1

</llo_original>
